<compile_context>
chip_gen: v7x
topology: tpu7x:2x2x1
jax: 0.10.0
libtpu: 0.0.40
codegen_flags: <defaults>
</compile_context>

<pallas_src>
import functools

import jax
import jax.numpy as jnp
from jax.experimental import pallas as pl
from jax.experimental.pallas import tpu as pltpu

LATENT = 128   # enc_dims[-1]
HIDDEN = 256   # enc_dims[1]

# VMEM sizing: conservative for v7x (64 MiB physical per TensorCore). On
# v5e/v6e (128 MiB physical) these can be raised; we always pass
# vmem_limit_bytes explicitly since v5e's default scoped limit is only 16 MiB.
_VMEM_BUDGET = 40 * 1024 * 1024   # planning budget used to size tiles
_VMEM_LIMIT = 50 * 1024 * 1024    # scoped limit handed to Mosaic (headroom)


def _round_up(x, m):
    return ((x + m - 1) // m) * m


def _cdiv(a, b):
    return -(-a // b)


# ---------------------------------------------------------------------------
# Kernels
# ---------------------------------------------------------------------------
def _vae_resident_kernel(x_ref, w1_ref, b1_ref, w2_ref, b2_ref, z_ref):
    """One batch tile, full item dimension; W1 stays VMEM-resident."""
    x = x_ref[...]
    # F.normalize: 1/max(||x||, 1e-12) == rsqrt(max(sum(x^2), 1e-24)); f32 EUP.
    xf = x.astype(jnp.float32)
    ssq = jnp.sum(xf * xf, axis=-1, keepdims=True)
    inv_norm = jax.lax.rsqrt(jnp.maximum(ssq, 1e-24))
    # (x/||x||) @ W1 == (x @ W1) * inv_norm  -> normalize folded into matmul.
    acc = jnp.dot(x.astype(jnp.bfloat16), w1_ref[...],
                  preferred_element_type=jnp.float32)
    h1 = jnp.tanh(acc * inv_norm + b1_ref[...])
    z = jnp.dot(h1.astype(jnp.bfloat16), w2_ref[...],
                preferred_element_type=jnp.float32) + b2_ref[...]
    z_ref[...] = z.astype(z_ref.dtype)


def _vae_streaming_kernel(x_ref, w1_ref, b1_ref, w2_ref, b2_ref, z_ref,
                          acc_ref, ssq_ref, *, n_items, tk):
    """Fallback for very large item catalogs: stream W1/x over a K grid axis."""
    k = pl.program_id(1)

    @pl.when(k == 0)
    def _():
        acc_ref[...] = jnp.zeros_like(acc_ref)
        ssq_ref[...] = jnp.zeros_like(ssq_ref)

    x = x_ref[...]
    w1 = w1_ref[...]
    if n_items % tk != 0:  # static: only emitted when a tail K tile exists
        # Zero out-of-range columns of x and rows of W1 so partial-block
        # garbage cannot reach acc/ssq (replaces the old runtime jnp.pad).
        base = k * tk
        col = base + jax.lax.broadcasted_iota(jnp.int32, x.shape, 1)
        x = jnp.where(col < n_items, x, jnp.zeros_like(x))
        row = base + jax.lax.broadcasted_iota(jnp.int32, w1.shape, 0)
        w1 = jnp.where(row < n_items, w1, jnp.zeros_like(w1))

    xf = x.astype(jnp.float32)
    ssq_ref[...] += jnp.sum(xf * xf, axis=-1, keepdims=True)
    acc_ref[...] += jnp.dot(x.astype(jnp.bfloat16), w1,
                            preferred_element_type=jnp.float32)

    @pl.when(k == pl.num_programs(1) - 1)
    def _():
        inv_norm = jax.lax.rsqrt(jnp.maximum(ssq_ref[...], 1e-24))
        h1 = jnp.tanh(acc_ref[...] * inv_norm + b1_ref[...])
        z = jnp.dot(h1.astype(jnp.bfloat16), w2_ref[...],
                    preferred_element_type=jnp.float32) + b2_ref[...]
        z_ref[...] = z.astype(z_ref.dtype)


# ---------------------------------------------------------------------------
# pallas_call wrappers
# ---------------------------------------------------------------------------
@functools.partial(jax.jit, static_argnames=("tm",))
def _forward_resident(x, w1_bf, b1_f, w2_mu, b2_mu, *, tm):
    B, n_items = x.shape
    return pl.pallas_call(
        _vae_resident_kernel,
        out_shape=jax.ShapeDtypeStruct((B, LATENT), jnp.float32),
        grid_spec=pltpu.PrefetchScalarGridSpec(
            num_scalar_prefetch=0,
            grid=(pl.cdiv(B, tm),),
            in_specs=[
                pl.BlockSpec((tm, n_items), lambda i: (i, 0)),        # x tile
                pl.BlockSpec((n_items, HIDDEN), lambda i: (0, 0)),    # W1 (resident)
                pl.BlockSpec((1, HIDDEN), lambda i: (0, 0)),          # b1
                pl.BlockSpec((HIDDEN, LATENT), lambda i: (0, 0)),     # W2_mu
                pl.BlockSpec((1, LATENT), lambda i: (0, 0)),          # b2_mu
            ],
            out_specs=pl.BlockSpec((tm, LATENT), lambda i: (i, 0)),
        ),
        compiler_params=pltpu.CompilerParams(
            dimension_semantics=("parallel",),
            vmem_limit_bytes=_VMEM_LIMIT,
        ),
    )(x, w1_bf, b1_f, w2_mu, b2_mu)


@functools.partial(jax.jit, static_argnames=("tm", "tk"))
def _forward_streaming(x, w1_bf, b1_f, w2_mu, b2_mu, *, tm, tk):
    B, n_items = x.shape
    kernel = functools.partial(_vae_streaming_kernel, n_items=n_items, tk=tk)
    return pl.pallas_call(
        kernel,
        out_shape=jax.ShapeDtypeStruct((B, LATENT), jnp.float32),
        grid_spec=pltpu.PrefetchScalarGridSpec(
            num_scalar_prefetch=0,
            grid=(pl.cdiv(B, tm), pl.cdiv(n_items, tk)),
            in_specs=[
                pl.BlockSpec((tm, tk), lambda i, k: (i, k)),          # x tile
                pl.BlockSpec((tk, HIDDEN), lambda i, k: (k, 0)),      # W1 tile
                pl.BlockSpec((1, HIDDEN), lambda i, k: (0, 0)),       # b1
                pl.BlockSpec((HIDDEN, LATENT), lambda i, k: (0, 0)),  # W2_mu
                pl.BlockSpec((1, LATENT), lambda i, k: (0, 0)),       # b2_mu
            ],
            out_specs=pl.BlockSpec((tm, LATENT), lambda i, k: (i, 0)),
            scratch_shapes=[
                pltpu.VMEM((tm, HIDDEN), jnp.float32),  # x @ W1 accumulator
                pltpu.VMEM((tm, 1), jnp.float32),       # sum-of-squares acc
            ],
        ),
        compiler_params=pltpu.CompilerParams(
            dimension_semantics=("parallel", "arbitrary"),
            vmem_limit_bytes=_VMEM_LIMIT,
        ),
    )(x, w1_bf, b1_f, w2_mu, b2_mu)


# ---------------------------------------------------------------------------
# Host-side helpers
# ---------------------------------------------------------------------------
def prepare_params(w1, b1, w2, b2):
    """One-time weight prep, hoisted out of the per-call path.

    Returns (W1 bf16 (n_items,256), b1 f32 (1,256),
             W2_mu bf16 (256,128), b2_mu f32 (1,128)).
    """
    w1_bf = jnp.asarray(w1, jnp.float32).astype(jnp.bfloat16)
    b1_f = jnp.asarray(b1, jnp.float32).reshape(1, HIDDEN)
    w2_mu = jnp.asarray(w2, jnp.float32)[:, :LATENT].astype(jnp.bfloat16)
    b2_mu = jnp.asarray(b2, jnp.float32).reshape(1, 2 * LATENT)[:, :LATENT]
    return w1_bf, b1_f, w2_mu, b2_mu


def _choose_config(B, n_items):
    """Pick (mode, tm, tk) under a conservative (v7x-safe) VMEM budget."""
    def batch_tile(per_row_bytes, avail_bytes, cap):
        tm = max(8, min(cap, (avail_bytes // max(per_row_bytes, 1)) // 8 * 8))
        tm = min(tm, _round_up(B, 8))
        # v7x has two TensorCores sharded along the "parallel" batch axis:
        # keep at least two batch tiles whenever the batch allows it.
        if B > 8:
            tm = min(tm, _round_up(_cdiv(B, 2), 8))
        return max(8, tm)

    # --- resident-W1 path: W1 DMA'd from HBM exactly once -------------------
    w1_bytes = 2 * n_items * HIDDEN * 2          # bf16, x2 pipeline buffers
    per_row = (2 * n_items * 2                   # bf16 x tile, double buffered
               + 2 * n_items * 4                 # f32 intermediates (row norm)
               + 8 * HIDDEN * 4                  # acc / h1 / misc
               + 2 * LATENT * 4)                 # z tile, double buffered
    avail = _VMEM_BUDGET - w1_bytes
    if avail >= 8 * per_row:
        return "resident", batch_tile(per_row, avail, 1024), None

    # --- K-streaming fallback (very large item catalogs) --------------------
    tk = min(2048, _round_up(n_items, 128))
    w1_tile = 2 * tk * HIDDEN * 2
    per_row = 2 * tk * 2 + 2 * tk * 4 + 8 * HIDDEN * 4 + 2 * LATENT * 4
    avail = _VMEM_BUDGET - w1_tile
    return "streaming", batch_tile(per_row, avail, 512), tk


def vae_forward(x, params, idx=None, *, force_mode=None, tm=None, tk=None):
    """Eval-mode VAE.forward: returns (z, None, None) with z == mu.

    `params` must come from prepare_params() (weight prep is one-time).
    `x` may be f32 or bf16; feeding bf16 halves the dominant HBM stream.
    """
    del idx  # unused by the computation, kept for interface parity
    # TODO(synk): training-mode dropout and eps*std+mu sampling not reproduced.
    w1_bf, b1_f, w2_mu, b2_mu = params
    if x.ndim < 2:
        x = x[None, :]
    B, n_items = x.shape
    assert w1_bf.shape == (n_items, HIDDEN)

    mode, auto_tm, auto_tk = _choose_config(B, n_items)
    if force_mode is not None:
        mode = force_mode
    if tm is None:
        tm = auto_tm

    if mode == "resident":
        z = _forward_resident(x, w1_bf, b1_f, w2_mu, b2_mu, tm=tm)
    else:
        if tk is None:
            tk = auto_tk if auto_tk is not None else min(
                2048, _round_up(n_items, 128))
        z = _forward_streaming(x, w1_bf, b1_f, w2_mu, b2_mu, tm=tm, tk=tk)
    return z, None, None


def init_params(key, n_items):
    """Deterministic init matching VAE.init_weights (std = sqrt(2/(fi+fo))).

    Weights are stored pre-transposed as (in, out) so the kernel computes
    h @ W + b directly on the MXU.
    """
    k1, k2, k3, k4 = jax.random.split(key, 4)

    std1 = (2.0 / (n_items + HIDDEN)) ** 0.5
    w1 = jax.random.normal(k1, (n_items, HIDDEN), jnp.float32) * std1
    b1 = jax.random.normal(k2, (1, HIDDEN), jnp.float32) * 0.001

    std2 = (2.0 / (HIDDEN + 2 * LATENT)) ** 0.5
    w2 = jax.random.normal(k3, (HIDDEN, 2 * LATENT), jnp.float32) * std2
    b2 = jax.random.normal(k4, (1, 2 * LATENT), jnp.float32) * 0.001
    return w1, b1, w2, b2


def reference_forward(x, w1, b1, w2, b2):
    """Pure-JAX reference using the same bf16 quantization as the kernel."""
    xq = x.astype(jnp.bfloat16).astype(jnp.float32)
    w1q = w1.astype(jnp.bfloat16).astype(jnp.float32)
    w2q = w2.astype(jnp.bfloat16).astype(jnp.float32)
    norm = jnp.maximum(jnp.linalg.norm(xq, axis=-1, keepdims=True), 1e-12)
    h = xq / norm
    h1 = jnp.tanh(h @ w1q + b1)
    h2 = h1 @ w2q + b2
    return h2[:, :LATENT]


if __name__ == "__main__":
    key = jax.random.PRNGKey(0)
    k_x, k_p = jax.random.split(key)

    # Small, deliberately non-256-aligned item count: exercises the no-pad
    # resident path and the streaming kernel's tail-K masking (1152 % 256 != 0).
    B, N_ITEMS = 16, 1152
    x = jax.random.uniform(k_x, (B, N_ITEMS), jnp.float32)
    x_bf = x.astype(jnp.bfloat16)          # feed activations as bf16
    idx = jnp.arange(B, dtype=jnp.int32)   # forward()'s idx arg is unused

    w1, b1, w2, b2 = init_params(k_p, N_ITEMS)
    params = prepare_params(w1, b1, w2, b2)   # one-time, hoisted weight prep

    z_ref = reference_forward(x, w1, b1, w2, b2)

    # Path A: resident-W1 (default config -> tm=8, 2 batch tiles).
    z, mu_none, logvar_none = vae_forward(x_bf, params, idx)
    z = jax.block_until_ready(z)
    assert z.shape == (B, LATENT) and z.dtype == jnp.float32
    assert mu_none is None and logvar_none is None
    assert jnp.allclose(z, z_ref, atol=2e-2, rtol=2e-2), "resident mismatch"

    # Path B: forced K-streaming fallback (partial tail K tile -> masking path).
    z2, _, _ = vae_forward(x_bf, params, idx,
                           force_mode="streaming", tm=8, tk=256)
    z2 = jax.block_until_ready(z2)
    assert jnp.allclose(z2, z_ref, atol=2e-2, rtol=2e-2), "streaming mismatch"

    print("KERNEL_OK")
</pallas_src>

<mosaic_0001>
module attributes {stable_mosaic.version = 11 : i64} {
  func.func @_vae_resident_kernel(%arg0: i32, %arg1: memref<8x1152xbf16, #tpu.memory_space<vmem>>, %arg2: memref<1152x256xbf16, #tpu.memory_space<vmem>>, %arg3: memref<1x256xf32, #tpu.memory_space<vmem>>, %arg4: memref<256x128xbf16, #tpu.memory_space<vmem>>, %arg5: memref<1x128xf32, #tpu.memory_space<vmem>>, %arg6: memref<8x128xf32, #tpu.memory_space<vmem>>) attributes {dimension_semantics = [#tpu.dimension_semantics<parallel>], iteration_bounds = array<i64: 2>, scalar_prefetch = 0 : i64, scratch_operands = 0 : i64, tpu.core_type = #tpu.core_type<tc>, window_params = [{transform_indices = @transform_0, window_bounds = array<i64: 8, 1152>}, {pipeline_mode = #tpu.pipeline_mode<synchronous>, transform_indices = @transform_1, window_bounds = array<i64: 1152, 256>}, {pipeline_mode = #tpu.pipeline_mode<synchronous>, transform_indices = @transform_2, window_bounds = array<i64: 1, 256>}, {pipeline_mode = #tpu.pipeline_mode<synchronous>, transform_indices = @transform_3, window_bounds = array<i64: 256, 128>}, {pipeline_mode = #tpu.pipeline_mode<synchronous>, transform_indices = @transform_4, window_bounds = array<i64: 1, 128>}, {transform_indices = @transform_5, window_bounds = array<i64: 8, 128>}]} {
    %c0 = arith.constant 0 : index
    %c0_0 = arith.constant 0 : index
    %0 = vector.load %arg1[%c0, %c0_0] : memref<8x1152xbf16, #tpu.memory_space<vmem>>, vector<8x1152xbf16>
    %1 = arith.extf %0 : vector<8x1152xbf16> to vector<8x1152xf32>
    %2 = arith.mulf %1, %1 : vector<8x1152xf32>
    %cst = arith.constant dense<0.000000e+00> : vector<8xf32>
    %3 = vector.multi_reduction <add>, %2, %cst [1] : vector<8x1152xf32> to vector<8xf32>
    %4 = vector.shape_cast %3 : vector<8xf32> to vector<8x1xf32>
    %cst_1 = arith.constant 1.000000e-24 : f32
    %5 = vector.broadcast %cst_1 : f32 to vector<8x1xf32>
    %6 = arith.maximumf %4, %5 : vector<8x1xf32>
    %7 = math.rsqrt %6 : vector<8x1xf32>
    %c0_2 = arith.constant 0 : index
    %c0_3 = arith.constant 0 : index
    %8 = vector.load %arg2[%c0_2, %c0_3] : memref<1152x256xbf16, #tpu.memory_space<vmem>>, vector<1152x256xbf16>
    %cst_4 = arith.constant dense<0.000000e+00> : vector<8x256xf32>
    %9 = tpu.matmul %0, %8, %cst_4 {dimension_numbers = #tpu.dot_dimension_numbers<[1], [0], [0], [1], [0, 0, 1, 1], [], []>} : vector<8x1152xbf16>, vector<1152x256xbf16>, vector<8x256xf32> -> vector<8x256xf32>
    %10 = vector.broadcast %7 : vector<8x1xf32> to vector<8x256xf32>
    %11 = arith.mulf %9, %10 : vector<8x256xf32>
    %c0_5 = arith.constant 0 : index
    %c0_6 = arith.constant 0 : index
    %12 = vector.load %arg3[%c0_5, %c0_6] : memref<1x256xf32, #tpu.memory_space<vmem>>, vector<1x256xf32>
    %13 = vector.broadcast %12 : vector<1x256xf32> to vector<8x256xf32>
    %14 = arith.addf %11, %13 : vector<8x256xf32>
    %15 = math.tanh %14 : vector<8x256xf32>
    %16 = arith.truncf %15 : vector<8x256xf32> to vector<8x256xbf16>
    %c0_7 = arith.constant 0 : index
    %c0_8 = arith.constant 0 : index
    %17 = vector.load %arg4[%c0_7, %c0_8] : memref<256x128xbf16, #tpu.memory_space<vmem>>, vector<256x128xbf16>
    %cst_9 = arith.constant dense<0.000000e+00> : vector<8x128xf32>
    %18 = tpu.matmul %16, %17, %cst_9 {dimension_numbers = #tpu.dot_dimension_numbers<[1], [0], [0], [1], [0, 0, 1, 1], [], []>} : vector<8x256xbf16>, vector<256x128xbf16>, vector<8x128xf32> -> vector<8x128xf32>
    %c0_10 = arith.constant 0 : index
    %c0_11 = arith.constant 0 : index
    %19 = vector.load %arg5[%c0_10, %c0_11] : memref<1x128xf32, #tpu.memory_space<vmem>>, vector<1x128xf32>
    %20 = vector.broadcast %19 : vector<1x128xf32> to vector<8x128xf32>
    %21 = arith.addf %18, %20 : vector<8x128xf32>
    %c0_12 = arith.constant 0 : index
    %c0_13 = arith.constant 0 : index
    %22 = vector.load %arg6[%c0_12, %c0_13] : memref<8x128xf32, #tpu.memory_space<vmem>>, vector<8x128xf32>
    tpu.vector_store %arg6[%c0_12, %c0_13], %21 {strides = array<i32>} : memref<8x128xf32, #tpu.memory_space<vmem>>, vector<8x128xf32>,
    return
  }
  func.func @transform_0(%arg0: i32) -> (i32, i32) {
    %c0_i32 = arith.constant 0 : i32
    %c0_i32_0 = arith.constant 0 : i32
    return %arg0, %c0_i32 : i32, i32
  }
  func.func @transform_1(%arg0: i32) -> (i32, i32) {
    %c0_i32 = arith.constant 0 : i32
    %c0_i32_0 = arith.constant 0 : i32
    %c0_i32_1 = arith.constant 0 : i32
    return %c0_i32, %c0_i32_0 : i32, i32
  }
  func.func @transform_2(%arg0: i32) -> (i32, i32) {
    %c0_i32 = arith.constant 0 : i32
    %c0_i32_0 = arith.constant 0 : i32
    %c0_i32_1 = arith.constant 0 : i32
    return %c0_i32, %c0_i32_0 : i32, i32
  }
  func.func @transform_3(%arg0: i32) -> (i32, i32) {
    %c0_i32 = arith.constant 0 : i32
    %c0_i32_0 = arith.constant 0 : i32
    %c0_i32_1 = arith.constant 0 : i32
    return %c0_i32, %c0_i32_0 : i32, i32
  }
  func.func @transform_4(%arg0: i32) -> (i32, i32) {
    %c0_i32 = arith.constant 0 : i32
    %c0_i32_0 = arith.constant 0 : i32
    %c0_i32_1 = arith.constant 0 : i32
    return %c0_i32, %c0_i32_0 : i32, i32
  }
  func.func @transform_5(%arg0: i32) -> (i32, i32) {
    %c0_i32 = arith.constant 0 : i32
    %c0_i32_0 = arith.constant 0 : i32
    return %arg0, %c0_i32 : i32, i32
  }
}

</mosaic_0001>

<llo_original>
// kernel: _forward_resident.1
$region0: #{_forward_resident.1}
  #allocation0 [shape = 'u32[]', space=smem, size = 0x4, offset = 0x4, fixed_abs, tag = 'smem constant byte address 0x4 - core index']
  #allocation1 [shape = 'u32[144,128]{1,0:T(1,128)}', space=vmem, size = 0x12000, scoped, tag = 'internal scratch']
  %s0 = inlined_call_operand.hbm [shape: bf16[16,1152], index: 0, kind: input, shape index: {}]
  %s1 = inlined_call_operand.hbm [shape: bf16[1152,256], index: 1, kind: input, shape index: {}]
  %s2 = inlined_call_operand.vmem [shape: f32[1,256], index: 2, kind: input, shape index: {}]
  %s3 = inlined_call_operand.hbm [shape: bf16[256,128], index: 3, kind: input, shape index: {}]
  %s4 = inlined_call_operand.vmem [shape: f32[1,128], index: 4, kind: input, shape index: {}]
  %s5 = inlined_call_operand.hbm [shape: f32[16,128], index: 5, kind: output, shape index: {}]
  %s6 = sld [smem:[#allocation0]]
  $region65: #{_forward_resident.1} parent=0
    _
  %s8 = ssub.s32 1, %s6
  %s9 = scalar_select 0, %s8, %s6
  $region1: #{_forward_resident.1} parent=0
    #allocation2 [shape = 'u8[36864]{0}', space=vmem, size = 0x9000, scoped, tag = 'input window, operand 0']
    #allocation3 [shape = 's32[2]{0}', space=sflag, size = 0x8, scoped, tag = 'scoped memory for _forward_resident.1']
    #allocation4 [shape = 's32[2]{0}', space=sflag, size = 0x8, scoped, tag = 'scoped memory for _forward_resident.1']
    #allocation5 [shape = 'u8[589824]{0}', space=vmem, size = 0x90000, scoped, tag = 'input window, operand 1, single buffered']
    #allocation6 [shape = 's32[1]{0}', space=sflag, size = 0x4, scoped, tag = 'scoped memory for _forward_resident.1']
    #allocation7 [shape = 'u8[65536]{0}', space=vmem, size = 0x10000, scoped, tag = 'input window, operand 3, single buffered']
    #allocation8 [shape = 'u8[8192]{0}', space=vmem, size = 0x2000, scoped, tag = 'output window, operand 0']
    %10 = vsyncpa [#allocation3], 0
    %s11 = scalar_lea.sflag [#allocation3], 1
    %12 = vsyncpa %s11, 0
    %13 = vsyncpa [#allocation6], 0
    %14 = vsyncpa [#allocation4], 0
    %s15 = scalar_lea.sflag [#allocation4], 1
    %16 = vsyncpa %s15, 0
    loop: start=0, step=1, limit=4
    $region2: #{_forward_resident.1} parent=1 // loop_pre_header
      _
    $region3: #{_forward_resident.1} parent=1 // loop_header
      %s18 = sphi 0, %s22
      %p19 = scmp.ge.s32.totalorder %s18, 4
      %s28 = sphi 0, %s30
      %s31 = sphi 0, %s28
      %s32 = sphi 0, %s31
      %s48 = sphi 0, %s32
      %s52 = sphi 0, %s52
      %s54 = sphi 0, %s52
      %s55 = sphi 0, %s54
      %s69 = sphi 0, %s55
      %s73 = sphi 0, %s73
      %s75 = sphi 0, %s73
      %s76 = sphi 0, %s75
      %s90 = sphi 0, %s76
      %s94 = sphi 0, %s94
      %s96 = sphi 0, %s94
      %s97 = sphi 0, %s96
      %s111 = sphi 0, %s97
      %s115 = sphi 0, %s115
      %s117 = sphi 0, %s115
      %s118 = sphi 0, %s117
      %s132 = sphi 0, %s118
      %s138 = sphi 0, %s140
      %s141 = sphi 0, %s138
      %s142 = sphi 0, %s141
      %s158 = sphi 0, %s142
    $region4: #{_forward_resident.1} parent=1 // loop_header_branch
      %21 = sbr.rel (%p19) target = $region8
    $region5: #{_forward_resident.1} parent=1 // loop_body
      %s23 = ssub.s32 %s18, 1
      %s24 = ssub.s32 %s18, 2
      %s25 = sadd.s32 %s18, 1
      %s26 = ssub.s32 %s18, %s25
      %p27 = scmp.eq.s32.totalorder %s26, 0
      %s29 = sadd.s32 %s28, 1
      %s30 = scalar_select %p27, %s28, %s29
      %p33 = pneg %p27
      %p34 = scmp.eq.s32.totalorder %s18, 1
      %p35 = por %p33, %p34
      %p36 = scmp.ne.s32.totalorder %s28, %s31
      %p37 = scmp.eq.s32.totalorder %s18, 0
      %p38 = por %p36, %p37
      %p39 = scmp.ne.s32.totalorder %s28, %s31
      %p40 = scmp.eq.s32.totalorder %s23, 1
      %p41 = por %p39, %p40
      %p42 = scmp.ne.s32.totalorder %s31, %s32
      %p43 = scmp.eq.s32.totalorder %s23, 0
      %p44 = por %p42, %p43
      %p45 = scmp.ne.s32.totalorder %s31, %s32
      %p46 = scmp.eq.s32.totalorder %s24, 1
      %p47 = por %p45, %p46
      %p49 = scmp.ne.s32.totalorder %s32, %s48
      %p50 = scmp.eq.s32.totalorder %s24, 0
      %p51 = por %p49, %p50
      %s53 = sadd.s32 %s52, 1
      %p56 = scmp.eq.s32.totalorder %s18, 1
      %p57 = scmp.ne.s32.totalorder %s52, %s54
      %p58 = scmp.eq.s32.totalorder %s18, 0
      %p59 = por %p57, %p58
      %p60 = scmp.ne.s32.totalorder %s52, %s54
      %p61 = scmp.eq.s32.totalorder %s23, 1
      %p62 = por %p60, %p61
      %p63 = scmp.ne.s32.totalorder %s54, %s55
      %p64 = scmp.eq.s32.totalorder %s23, 0
      %p65 = por %p63, %p64
      %p66 = scmp.ne.s32.totalorder %s54, %s55
      %p67 = scmp.eq.s32.totalorder %s24, 1
      %p68 = por %p66, %p67
      %p70 = scmp.ne.s32.totalorder %s55, %s69
      %p71 = scmp.eq.s32.totalorder %s24, 0
      %p72 = por %p70, %p71
      %s74 = sadd.s32 %s73, 1
      %p77 = scmp.eq.s32.totalorder %s18, 1
      %p78 = scmp.ne.s32.totalorder %s73, %s75
      %p79 = scmp.eq.s32.totalorder %s18, 0
      %p80 = por %p78, %p79
      %p81 = scmp.ne.s32.totalorder %s73, %s75
      %p82 = scmp.eq.s32.totalorder %s23, 1
      %p83 = por %p81, %p82
      %p84 = scmp.ne.s32.totalorder %s75, %s76
      %p85 = scmp.eq.s32.totalorder %s23, 0
      %p86 = por %p84, %p85
      %p87 = scmp.ne.s32.totalorder %s75, %s76
      %p88 = scmp.eq.s32.totalorder %s24, 1
      %p89 = por %p87, %p88
      %p91 = scmp.ne.s32.totalorder %s76, %s90
      %p92 = scmp.eq.s32.totalorder %s24, 0
      %p93 = por %p91, %p92
      %s95 = sadd.s32 %s94, 1
      %p98 = scmp.eq.s32.totalorder %s18, 1
      %p99 = scmp.ne.s32.totalorder %s94, %s96
      %p100 = scmp.eq.s32.totalorder %s18, 0
      %p101 = por %p99, %p100
      %p102 = scmp.ne.s32.totalorder %s94, %s96
      %p103 = scmp.eq.s32.totalorder %s23, 1
      %p104 = por %p102, %p103
      %p105 = scmp.ne.s32.totalorder %s96, %s97
      %p106 = scmp.eq.s32.totalorder %s23, 0
      %p107 = por %p105, %p106
      %p108 = scmp.ne.s32.totalorder %s96, %s97
      %p109 = scmp.eq.s32.totalorder %s24, 1
      %p110 = por %p108, %p109
      %p112 = scmp.ne.s32.totalorder %s97, %s111
      %p113 = scmp.eq.s32.totalorder %s24, 0
      %p114 = por %p112, %p113
      %s116 = sadd.s32 %s115, 1
      %p119 = scmp.eq.s32.totalorder %s18, 1
      %p120 = scmp.ne.s32.totalorder %s115, %s117
      %p121 = scmp.eq.s32.totalorder %s18, 0
      %p122 = por %p120, %p121
      %p123 = scmp.ne.s32.totalorder %s115, %s117
      %p124 = scmp.eq.s32.totalorder %s23, 1
      %p125 = por %p123, %p124
      %p126 = scmp.ne.s32.totalorder %s117, %s118
      %p127 = scmp.eq.s32.totalorder %s23, 0
      %p128 = por %p126, %p127
      %p129 = scmp.ne.s32.totalorder %s117, %s118
      %p130 = scmp.eq.s32.totalorder %s24, 1
      %p131 = por %p129, %p130
      %p133 = scmp.ne.s32.totalorder %s118, %s132
      %p134 = scmp.eq.s32.totalorder %s24, 0
      %p135 = por %p133, %p134
      %s136 = ssub.s32 %s18, %s25
      %p137 = scmp.eq.s32.totalorder %s136, 0
      %s139 = sadd.s32 %s138, 1
      %s140 = scalar_select %p137, %s138, %s139
      %p143 = pneg %p137
      %p144 = scmp.eq.s32.totalorder %s18, 1
      %p145 = por %p143, %p144
      %p146 = scmp.ne.s32.totalorder %s138, %s141
      %p147 = scmp.eq.s32.totalorder %s18, 0
      %p148 = por %p146, %p147
      %p149 = scmp.ne.s32.totalorder %s138, %s141
      %p150 = scmp.eq.s32.totalorder %s23, 1
      %p151 = por %p149, %p150
      %p152 = scmp.ne.s32.totalorder %s141, %s142
      %p153 = scmp.eq.s32.totalorder %s23, 0
      %p154 = por %p152, %p153
      %p155 = scmp.ne.s32.totalorder %s141, %s142
      %p156 = scmp.eq.s32.totalorder %s24, 1
      %p157 = por %p155, %p156
      %p159 = scmp.ne.s32.totalorder %s142, %s158
      %p160 = scmp.eq.s32.totalorder %s24, 0
      %p161 = por %p159, %p160
      %p162 = scmp.le.s32.totalorder 1, %s18
      %p163 = scmp.lt.s32.totalorder %s18, 3
      %p164 = pnand %p162, %p163
      %p165 = pneg %p164
      // Predicated region
      $region9: #{_forward_resident.1} parent=5 // pred_check
        _
      $region10: #{_forward_resident.1} parent=5 // pred_check_branch
        %167 = sbr.rel (%p164) target = $region12
      $region11: #{_forward_resident.1} parent=5 // pred_region
        %s168 = ssub.s32 %s18, 1
        // Predicated region
        $region13: #{_forward_resident.1} parent=11 // pred_check
          %p169 = pneg %p65
        $region14: #{_forward_resident.1} parent=11 // pred_check_branch
          %171 = sbr.rel (%p169) target = $region16
        $region15: #{_forward_resident.1} parent=11 // pred_region
          %s173 = ssub.s32 18432, 18432
          %174 = vsyncadd [#allocation6], %s173
          %s175 = sshll.u32 [#allocation5], 4
          %s176 = int_to_ptr.vmem [resolvable:$true] %s175
          %181 = dma.hbm_to_vmem [thread:$0]  %s1, 18432, %s176, [#allocation6], 128, 128, 8
        $region16: #{_forward_resident.1} parent=11 // pred_fallthru
          _
        // Predicated region
        $region17: #{_forward_resident.1} parent=11 // pred_check
          %p182 = pneg %p86
        $region18: #{_forward_resident.1} parent=11 // pred_check_branch
          %184 = sbr.rel (%p182) target = $region20
        $region19: #{_forward_resident.1} parent=11 // pred_region
          _
        $region20: #{_forward_resident.1} parent=11 // pred_fallthru
          _
        // Predicated region
        $region21: #{_forward_resident.1} parent=11 // pred_check
          %p185 = pneg %p107
        $region22: #{_forward_resident.1} parent=11 // pred_check_branch
          %187 = sbr.rel (%p185) target = $region24
        $region23: #{_forward_resident.1} parent=11 // pred_region
          %s189 = ssub.s32 2048, 2048
          %190 = vsyncadd [#allocation6], %s189
          %s191 = sshll.u32 [#allocation7], 4
          %s192 = int_to_ptr.vmem [resolvable:$true] %s191
          %197 = dma.hbm_to_vmem [thread:$0]  %s3, 2048, %s192, [#allocation6], 64, 64, 4
        $region24: #{_forward_resident.1} parent=11 // pred_fallthru
          _
        // Predicated region
        $region25: #{_forward_resident.1} parent=11 // pred_check
          %p198 = pneg %p128
        $region26: #{_forward_resident.1} parent=11 // pred_check_branch
          %200 = sbr.rel (%p198) target = $region28
        $region27: #{_forward_resident.1} parent=11 // pred_region
          _
        $region28: #{_forward_resident.1} parent=11 // pred_fallthru
          _
      $region12: #{_forward_resident.1} parent=5 // pred_fallthru
        _
      %p201 = scmp.lt.s32.totalorder %s18, 2
      // Predicated region
      $region29: #{_forward_resident.1} parent=5 // pred_check
        %p202 = pneg %p201
      $region30: #{_forward_resident.1} parent=5 // pred_check_branch
        %204 = sbr.rel (%p202) target = $region32
      $region31: #{_forward_resident.1} parent=5 // pred_region
        // Predicated region
        $region33: #{_forward_resident.1} parent=31 // pred_check
          %p205 = pneg %p38
        $region34: #{_forward_resident.1} parent=31 // pred_check_branch
          %207 = sbr.rel (%p205) target = $region36
        $region35: #{_forward_resident.1} parent=31 // pred_region
          %s208 = sand.u32 %s28, 1
          %s209 = scalar_lea.sflag [#allocation3], %s208
          %s210 = sand.u32 %s28, 1
          %s211 = smul.addr %s210, 36
          %s212 = scalar_lea.vmem [#allocation2], %s211
          %s214 = ssub.s32 576, 576
          %215 = vsyncadd %s209, %s214
          %s216 = smul.addr %s18, 9
          %s217 = smul.addr %s216, 64
          %s218 = scalar_lea.hbm %s0, %s217
          %s220 = sshll.u32 %s212, 4
          %s221 = int_to_ptr.vmem [resolvable:$true] %s220
          %223 = dma.hbm_to_vmem [thread:$0]  %s218, 576, %s221, %s209
        $region36: #{_forward_resident.1} parent=31 // pred_fallthru
          _
      $region32: #{_forward_resident.1} parent=5 // pred_fallthru
        _
      %p224 = scmp.le.s32.totalorder 1, %s18
      %p225 = scmp.lt.s32.totalorder %s18, 3
      %p226 = pnand %p224, %p225
      %p227 = pneg %p226
      // Predicated region
      $region37: #{_forward_resident.1} parent=5 // pred_check
        _
      $region38: #{_forward_resident.1} parent=5 // pred_check_branch
        %229 = sbr.rel (%p226) target = $region40
      $region39: #{_forward_resident.1} parent=5 // pred_region
        %s230 = ssub.s32 %s18, 1
        %s231 = sand.u32 %s31, 1
        %s232 = scalar_lea.sflag [#allocation3], %s231
        %s233 = sand.u32 %s31, 1
        %s234 = smul.addr %s233, 36
        %s235 = scalar_lea.vmem [#allocation2], %s234
        // Predicated region
        $region41: #{_forward_resident.1} parent=39 // pred_check
          %p236 = pneg %p44
        $region42: #{_forward_resident.1} parent=39 // pred_check_branch
          %238 = sbr.rel (%p236) target = $region44
        $region43: #{_forward_resident.1} parent=39 // pred_region
          %239 = dma.done %s232, 576
        $region44: #{_forward_resident.1} parent=39 // pred_fallthru
          _
        // Predicated region
        $region45: #{_forward_resident.1} parent=39 // pred_check
          %p240 = pneg %p65
        $region46: #{_forward_resident.1} parent=39 // pred_check_branch
          %242 = sbr.rel (%p240) target = $region48
        $region47: #{_forward_resident.1} parent=39 // pred_region
          %243 = dma.done [#allocation6], 18432
        $region48: #{_forward_resident.1} parent=39 // pred_fallthru
          _
        // Predicated region
        $region49: #{_forward_resident.1} parent=39 // pred_check
          %p244 = pneg %p107
        $region50: #{_forward_resident.1} parent=39 // pred_check_branch
          %246 = sbr.rel (%p244) target = $region52
        $region51: #{_forward_resident.1} parent=39 // pred_region
          %247 = dma.done [#allocation6], 2048
        $region52: #{_forward_resident.1} parent=39 // pred_fallthru
          _
        %s248 = sand.u32 %s31, 1
        %s249 = scalar_lea.sflag [#allocation3], %s248
        %s250 = sand.u32 %s31, 1
        %s251 = smul.addr %s250, 36
        %s252 = scalar_lea.vmem [#allocation2], %s251
        %p253 = pneg %p44
        %p254 = pneg %p41
        %p255 = pneg %p65
        %p256 = pneg %p62
        %p257 = pneg %p86
        %p258 = pneg %p83
        %p259 = pneg %p107
        %p260 = pneg %p104
        %p261 = pneg %p128
        %p262 = pneg %p125
        %p263 = pneg %p154
        %p264 = pneg %p151
        %s265 = sand.u32 %s141, 1
        %s266 = scalar_lea.sflag [#allocation4], %s265
        %s267 = sand.u32 %s141, 1
        %s268 = smul.addr %s267, 8
        %s269 = scalar_lea.vmem [#allocation8], %s268
        %v271 = vld [vmem:[%s235] sm:$0xff]
        %v272 = vld [vmem:[%s235 + $0x8] sm:$0xff]
        %v273 = vld [vmem:[%s235 + $0x10] sm:$0xff]
        %v274 = vld [vmem:[%s235 + $0x18] sm:$0xff]
        %v275 = vld [vmem:[%s235 + $0x20] sm:$0xf]
        %v276 = vunpack.c.l.bf16 %v271
        %v277 = vunpack.c.h.bf16 %v271
        %v278 = vunpack.c.l.bf16 %v272
        %v279 = vunpack.c.h.bf16 %v272
        %v280 = vunpack.c.l.bf16 %v273
        %v281 = vunpack.c.h.bf16 %v273
        %v282 = vunpack.c.l.bf16 %v274
        %v283 = vunpack.c.h.bf16 %v274
        %v284 = vunpack.c.l.bf16 %v275
        %v285 = vmul.f32 %v276, %v276
        %v286 = vmul.f32 %v277, %v277
        %v287 = vmul.f32 %v278, %v278
        %v288 = vmul.f32 %v279, %v279
        %v289 = vmul.f32 %v280, %v280
        %v290 = vmul.f32 %v281, %v281
        %v291 = vmul.f32 %v282, %v282
        %v292 = vmul.f32 %v283, %v283
        %v293 = vmul.f32 %v284, %v284
        %v294 = vadd.f32 %v285, %v286
        %v295 = vadd.f32 %v294, %v287
        %v296 = vadd.f32 %v295, %v288
        %v297 = vadd.f32 %v296, %v289
        %v298 = vadd.f32 %v297, %v290
        %v299 = vadd.f32 %v298, %v291
        %v300 = vadd.f32 %v299, %v292
        %v301 = vadd.f32 %v300, %v293
        %302 = vadd.xlane.f32.xlu0 %v301
        %v303 = vpop.xlane.xlu0 %302
        %v304 = vmax.f32 %v303, 1e-24
        %v305 = vrsqrt.pop %v304
        %v306 = vld [vmem:[#allocation5] sm:$0xff]
        %v307 = vld [vmem:[#allocation5 + $0x8] sm:$0xff]
        %v308 = vld [vmem:[#allocation5 + $0x10] sm:$0xff]
        %v309 = vld [vmem:[#allocation5 + $0x18] sm:$0xff]
        %v310 = vld [vmem:[#allocation5 + $0x20] sm:$0xff]
        %v311 = vld [vmem:[#allocation5 + $0x28] sm:$0xff]
        %v312 = vld [vmem:[#allocation5 + $0x30] sm:$0xff]
        %v313 = vld [vmem:[#allocation5 + $0x38] sm:$0xff]
        %v314 = vld [vmem:[#allocation5 + $0x40] sm:$0xff]
        %v315 = vld [vmem:[#allocation5 + $0x48] sm:$0xff]
        %v316 = vld [vmem:[#allocation5 + $0x50] sm:$0xff]
        %v317 = vld [vmem:[#allocation5 + $0x58] sm:$0xff]
        %v318 = vld [vmem:[#allocation5 + $0x60] sm:$0xff]
        %v319 = vld [vmem:[#allocation5 + $0x68] sm:$0xff]
        %v320 = vld [vmem:[#allocation5 + $0x70] sm:$0xff]
        %v321 = vld [vmem:[#allocation5 + $0x78] sm:$0xff]
        %v322 = vld [vmem:[#allocation5 + $0x80] sm:$0xff]
        %v323 = vld [vmem:[#allocation5 + $0x88] sm:$0xff]
        %v324 = vld [vmem:[#allocation5 + $0x90] sm:$0xff]
        %v325 = vld [vmem:[#allocation5 + $0x98] sm:$0xff]
        %v326 = vld [vmem:[#allocation5 + $0xa0] sm:$0xff]
        %v327 = vld [vmem:[#allocation5 + $0xa8] sm:$0xff]
        %v328 = vld [vmem:[#allocation5 + $0xb0] sm:$0xff]
        %v329 = vld [vmem:[#allocation5 + $0xb8] sm:$0xff]
        %v330 = vld [vmem:[#allocation5 + $0xc0] sm:$0xff]
        %v331 = vld [vmem:[#allocation5 + $0xc8] sm:$0xff]
        %v332 = vld [vmem:[#allocation5 + $0xd0] sm:$0xff]
        %v333 = vld [vmem:[#allocation5 + $0xd8] sm:$0xff]
        %v334 = vld [vmem:[#allocation5 + $0xe0] sm:$0xff]
        %v335 = vld [vmem:[#allocation5 + $0xe8] sm:$0xff]
        %v336 = vld [vmem:[#allocation5 + $0xf0] sm:$0xff]
        %v337 = vld [vmem:[#allocation5 + $0xf8] sm:$0xff]
        %v338 = vld [vmem:[#allocation5 + $0x100] sm:$0xff]
        %v339 = vld [vmem:[#allocation5 + $0x108] sm:$0xff]
        %v340 = vld [vmem:[#allocation5 + $0x110] sm:$0xff]
        %v341 = vld [vmem:[#allocation5 + $0x118] sm:$0xff]
        %v342 = vld [vmem:[#allocation5 + $0x120] sm:$0xff]
        %v343 = vld [vmem:[#allocation5 + $0x128] sm:$0xff]
        %v344 = vld [vmem:[#allocation5 + $0x130] sm:$0xff]
        %v345 = vld [vmem:[#allocation5 + $0x138] sm:$0xff]
        %v346 = vld [vmem:[#allocation5 + $0x140] sm:$0xff]
        %v347 = vld [vmem:[#allocation5 + $0x148] sm:$0xff]
        %v348 = vld [vmem:[#allocation5 + $0x150] sm:$0xff]
        %v349 = vld [vmem:[#allocation5 + $0x158] sm:$0xff]
        %v350 = vld [vmem:[#allocation5 + $0x160] sm:$0xff]
        %v351 = vld [vmem:[#allocation5 + $0x168] sm:$0xff]
        %v352 = vld [vmem:[#allocation5 + $0x170] sm:$0xff]
        %v353 = vld [vmem:[#allocation5 + $0x178] sm:$0xff]
        %v354 = vld [vmem:[#allocation5 + $0x180] sm:$0xff]
        %v355 = vld [vmem:[#allocation5 + $0x188] sm:$0xff]
        %v356 = vld [vmem:[#allocation5 + $0x190] sm:$0xff]
        %v357 = vld [vmem:[#allocation5 + $0x198] sm:$0xff]
        %v358 = vld [vmem:[#allocation5 + $0x1a0] sm:$0xff]
        %v359 = vld [vmem:[#allocation5 + $0x1a8] sm:$0xff]
        %v360 = vld [vmem:[#allocation5 + $0x1b0] sm:$0xff]
        %v361 = vld [vmem:[#allocation5 + $0x1b8] sm:$0xff]
        %v362 = vld [vmem:[#allocation5 + $0x1c0] sm:$0xff]
        %v363 = vld [vmem:[#allocation5 + $0x1c8] sm:$0xff]
        %v364 = vld [vmem:[#allocation5 + $0x1d0] sm:$0xff]
        %v365 = vld [vmem:[#allocation5 + $0x1d8] sm:$0xff]
        %v366 = vld [vmem:[#allocation5 + $0x1e0] sm:$0xff]
        %v367 = vld [vmem:[#allocation5 + $0x1e8] sm:$0xff]
        %v368 = vld [vmem:[#allocation5 + $0x1f0] sm:$0xff]
        %v369 = vld [vmem:[#allocation5 + $0x1f8] sm:$0xff]
        %v370 = vld [vmem:[#allocation5 + $0x200] sm:$0xff]
        %v371 = vld [vmem:[#allocation5 + $0x208] sm:$0xff]
        %v372 = vld [vmem:[#allocation5 + $0x210] sm:$0xff]
        %v373 = vld [vmem:[#allocation5 + $0x218] sm:$0xff]
        %v374 = vld [vmem:[#allocation5 + $0x220] sm:$0xff]
        %v375 = vld [vmem:[#allocation5 + $0x228] sm:$0xff]
        %v376 = vld [vmem:[#allocation5 + $0x230] sm:$0xff]
        %v377 = vld [vmem:[#allocation5 + $0x238] sm:$0xff]
        %v378 = vld [vmem:[#allocation5 + $0x240] sm:$0xff]
        %v379 = vld [vmem:[#allocation5 + $0x248] sm:$0xff]
        %v380 = vld [vmem:[#allocation5 + $0x250] sm:$0xff]
        %v381 = vld [vmem:[#allocation5 + $0x258] sm:$0xff]
        %v382 = vld [vmem:[#allocation5 + $0x260] sm:$0xff]
        %v383 = vld [vmem:[#allocation5 + $0x268] sm:$0xff]
        %v384 = vld [vmem:[#allocation5 + $0x270] sm:$0xff]
        %v385 = vld [vmem:[#allocation5 + $0x278] sm:$0xff]
        %v386 = vld [vmem:[#allocation5 + $0x280] sm:$0xff]
        %v387 = vld [vmem:[#allocation5 + $0x288] sm:$0xff]
        %v388 = vld [vmem:[#allocation5 + $0x290] sm:$0xff]
        %v389 = vld [vmem:[#allocation5 + $0x298] sm:$0xff]
        %v390 = vld [vmem:[#allocation5 + $0x2a0] sm:$0xff]
        %v391 = vld [vmem:[#allocation5 + $0x2a8] sm:$0xff]
        %v392 = vld [vmem:[#allocation5 + $0x2b0] sm:$0xff]
        %v393 = vld [vmem:[#allocation5 + $0x2b8] sm:$0xff]
        %v394 = vld [vmem:[#allocation5 + $0x2c0] sm:$0xff]
        %v395 = vld [vmem:[#allocation5 + $0x2c8] sm:$0xff]
        %v396 = vld [vmem:[#allocation5 + $0x2d0] sm:$0xff]
        %v397 = vld [vmem:[#allocation5 + $0x2d8] sm:$0xff]
        %v398 = vld [vmem:[#allocation5 + $0x2e0] sm:$0xff]
        %v399 = vld [vmem:[#allocation5 + $0x2e8] sm:$0xff]
        %v400 = vld [vmem:[#allocation5 + $0x2f0] sm:$0xff]
        %v401 = vld [vmem:[#allocation5 + $0x2f8] sm:$0xff]
        %v402 = vld [vmem:[#allocation5 + $0x300] sm:$0xff]
        %v403 = vld [vmem:[#allocation5 + $0x308] sm:$0xff]
        %v404 = vld [vmem:[#allocation5 + $0x310] sm:$0xff]
        %v405 = vld [vmem:[#allocation5 + $0x318] sm:$0xff]
        %v406 = vld [vmem:[#allocation5 + $0x320] sm:$0xff]
        %v407 = vld [vmem:[#allocation5 + $0x328] sm:$0xff]
        %v408 = vld [vmem:[#allocation5 + $0x330] sm:$0xff]
        %v409 = vld [vmem:[#allocation5 + $0x338] sm:$0xff]
        %v410 = vld [vmem:[#allocation5 + $0x340] sm:$0xff]
        %v411 = vld [vmem:[#allocation5 + $0x348] sm:$0xff]
        %v412 = vld [vmem:[#allocation5 + $0x350] sm:$0xff]
        %v413 = vld [vmem:[#allocation5 + $0x358] sm:$0xff]
        %v414 = vld [vmem:[#allocation5 + $0x360] sm:$0xff]
        %v415 = vld [vmem:[#allocation5 + $0x368] sm:$0xff]
        %v416 = vld [vmem:[#allocation5 + $0x370] sm:$0xff]
        %v417 = vld [vmem:[#allocation5 + $0x378] sm:$0xff]
        %v418 = vld [vmem:[#allocation5 + $0x380] sm:$0xff]
        %v419 = vld [vmem:[#allocation5 + $0x388] sm:$0xff]
        %v420 = vld [vmem:[#allocation5 + $0x390] sm:$0xff]
        %v421 = vld [vmem:[#allocation5 + $0x398] sm:$0xff]
        %v422 = vld [vmem:[#allocation5 + $0x3a0] sm:$0xff]
        %v423 = vld [vmem:[#allocation5 + $0x3a8] sm:$0xff]
        %v424 = vld [vmem:[#allocation5 + $0x3b0] sm:$0xff]
        %v425 = vld [vmem:[#allocation5 + $0x3b8] sm:$0xff]
        %v426 = vld [vmem:[#allocation5 + $0x3c0] sm:$0xff]
        %v427 = vld [vmem:[#allocation5 + $0x3c8] sm:$0xff]
        %v428 = vld [vmem:[#allocation5 + $0x3d0] sm:$0xff]
        %v429 = vld [vmem:[#allocation5 + $0x3d8] sm:$0xff]
        %v430 = vld [vmem:[#allocation5 + $0x3e0] sm:$0xff]
        %v431 = vld [vmem:[#allocation5 + $0x3e8] sm:$0xff]
        %v432 = vld [vmem:[#allocation5 + $0x3f0] sm:$0xff]
        %v433 = vld [vmem:[#allocation5 + $0x3f8] sm:$0xff]
        %v434 = vld [vmem:[#allocation5 + $0x400] sm:$0xff]
        %v435 = vld [vmem:[#allocation5 + $0x408] sm:$0xff]
        %v436 = vld [vmem:[#allocation5 + $0x410] sm:$0xff]
        %v437 = vld [vmem:[#allocation5 + $0x418] sm:$0xff]
        %v438 = vld [vmem:[#allocation5 + $0x420] sm:$0xff]
        %v439 = vld [vmem:[#allocation5 + $0x428] sm:$0xff]
        %v440 = vld [vmem:[#allocation5 + $0x430] sm:$0xff]
        %v441 = vld [vmem:[#allocation5 + $0x438] sm:$0xff]
        %v442 = vld [vmem:[#allocation5 + $0x440] sm:$0xff]
        %v443 = vld [vmem:[#allocation5 + $0x448] sm:$0xff]
        %v444 = vld [vmem:[#allocation5 + $0x450] sm:$0xff]
        %v445 = vld [vmem:[#allocation5 + $0x458] sm:$0xff]
        %v446 = vld [vmem:[#allocation5 + $0x460] sm:$0xff]
        %v447 = vld [vmem:[#allocation5 + $0x468] sm:$0xff]
        %v448 = vld [vmem:[#allocation5 + $0x470] sm:$0xff]
        %v449 = vld [vmem:[#allocation5 + $0x478] sm:$0xff]
        %v455 = vunpack.c.l.b16 %v271
        %v456 = vunpack.c.h.b16 %v271
        %v457 = vunpack.c.l.b16 %v272
        %v458 = vunpack.c.h.b16 %v272
        %v459 = vunpack.c.l.b16 %v273
        %v460 = vunpack.c.h.b16 %v273
        %v461 = vunpack.c.l.b16 %v274
        %v462 = vunpack.c.h.b16 %v274
        %v463 = vunpack.c.l.b16 %v275
        %v464 = vpack.c.b16 %v455, %v455
        %v465 = vpack.c.b16 %v456, %v456
        %v466 = vpack.c.b16 %v457, %v457
        %v467 = vpack.c.b16 %v458, %v458
        %v468 = vpack.c.b16 %v459, %v459
        %v469 = vpack.c.b16 %v460, %v460
        %v470 = vpack.c.b16 %v461, %v461
        %v471 = vpack.c.b16 %v462, %v462
        %v472 = vpack.c.b16 %v463, %v463
        %v626 = vunpack.c.l.b16 %v306
        %v627 = vunpack.c.h.b16 %v306
        %v628 = vunpack.c.l.b16 %v307
        %v629 = vunpack.c.h.b16 %v307
        %v630 = vunpack.c.l.b16 %v308
        %v631 = vunpack.c.h.b16 %v308
        %v632 = vunpack.c.l.b16 %v309
        %v633 = vunpack.c.h.b16 %v309
        %v634 = vunpack.c.l.b16 %v310
        %v635 = vunpack.c.h.b16 %v310
        %v636 = vunpack.c.l.b16 %v311
        %v637 = vunpack.c.h.b16 %v311
        %v638 = vunpack.c.l.b16 %v312
        %v639 = vunpack.c.h.b16 %v312
        %v640 = vunpack.c.l.b16 %v313
        %v641 = vunpack.c.h.b16 %v313
        %v642 = vunpack.c.l.b16 %v314
        %v643 = vunpack.c.h.b16 %v314
        %v644 = vunpack.c.l.b16 %v315
        %v645 = vunpack.c.h.b16 %v315
        %v646 = vunpack.c.l.b16 %v316
        %v647 = vunpack.c.h.b16 %v316
        %v648 = vunpack.c.l.b16 %v317
        %v649 = vunpack.c.h.b16 %v317
        %v650 = vunpack.c.l.b16 %v318
        %v651 = vunpack.c.h.b16 %v318
        %v652 = vunpack.c.l.b16 %v319
        %v653 = vunpack.c.h.b16 %v319
        %v654 = vunpack.c.l.b16 %v320
        %v655 = vunpack.c.h.b16 %v320
        %v656 = vunpack.c.l.b16 %v321
        %v657 = vunpack.c.h.b16 %v321
        %v658 = vunpack.c.l.b16 %v322
        %v659 = vunpack.c.h.b16 %v322
        %v660 = vunpack.c.l.b16 %v323
        %v661 = vunpack.c.h.b16 %v323
        %v662 = vunpack.c.l.b16 %v324
        %v663 = vunpack.c.h.b16 %v324
        %v664 = vunpack.c.l.b16 %v325
        %v665 = vunpack.c.h.b16 %v325
        %v666 = vunpack.c.l.b16 %v326
        %v667 = vunpack.c.h.b16 %v326
        %v668 = vunpack.c.l.b16 %v327
        %v669 = vunpack.c.h.b16 %v327
        %v670 = vunpack.c.l.b16 %v328
        %v671 = vunpack.c.h.b16 %v328
        %v672 = vunpack.c.l.b16 %v329
        %v673 = vunpack.c.h.b16 %v329
        %v674 = vunpack.c.l.b16 %v330
        %v675 = vunpack.c.h.b16 %v330
        %v676 = vunpack.c.l.b16 %v331
        %v677 = vunpack.c.h.b16 %v331
        %v678 = vunpack.c.l.b16 %v332
        %v679 = vunpack.c.h.b16 %v332
        %v680 = vunpack.c.l.b16 %v333
        %v681 = vunpack.c.h.b16 %v333
        %v682 = vunpack.c.l.b16 %v334
        %v683 = vunpack.c.h.b16 %v334
        %v684 = vunpack.c.l.b16 %v335
        %v685 = vunpack.c.h.b16 %v335
        %v686 = vunpack.c.l.b16 %v336
        %v687 = vunpack.c.h.b16 %v336
        %v688 = vunpack.c.l.b16 %v337
        %v689 = vunpack.c.h.b16 %v337
        %v690 = vunpack.c.l.b16 %v338
        %v691 = vunpack.c.h.b16 %v338
        %v692 = vunpack.c.l.b16 %v339
        %v693 = vunpack.c.h.b16 %v339
        %v694 = vunpack.c.l.b16 %v340
        %v695 = vunpack.c.h.b16 %v340
        %v696 = vunpack.c.l.b16 %v341
        %v697 = vunpack.c.h.b16 %v341
        %v698 = vunpack.c.l.b16 %v342
        %v699 = vunpack.c.h.b16 %v342
        %v700 = vunpack.c.l.b16 %v343
        %v701 = vunpack.c.h.b16 %v343
        %v702 = vunpack.c.l.b16 %v344
        %v703 = vunpack.c.h.b16 %v344
        %v704 = vunpack.c.l.b16 %v345
        %v705 = vunpack.c.h.b16 %v345
        %v706 = vunpack.c.l.b16 %v346
        %v707 = vunpack.c.h.b16 %v346
        %v708 = vunpack.c.l.b16 %v347
        %v709 = vunpack.c.h.b16 %v347
        %v710 = vunpack.c.l.b16 %v348
        %v711 = vunpack.c.h.b16 %v348
        %v712 = vunpack.c.l.b16 %v349
        %v713 = vunpack.c.h.b16 %v349
        %v714 = vunpack.c.l.b16 %v350
        %v715 = vunpack.c.h.b16 %v350
        %v716 = vunpack.c.l.b16 %v351
        %v717 = vunpack.c.h.b16 %v351
        %v718 = vunpack.c.l.b16 %v352
        %v719 = vunpack.c.h.b16 %v352
        %v720 = vunpack.c.l.b16 %v353
        %v721 = vunpack.c.h.b16 %v353
        %v722 = vunpack.c.l.b16 %v354
        %v723 = vunpack.c.h.b16 %v354
        %v724 = vunpack.c.l.b16 %v355
        %v725 = vunpack.c.h.b16 %v355
        %v726 = vunpack.c.l.b16 %v356
        %v727 = vunpack.c.h.b16 %v356
        %v728 = vunpack.c.l.b16 %v357
        %v729 = vunpack.c.h.b16 %v357
        %v730 = vunpack.c.l.b16 %v358
        %v731 = vunpack.c.h.b16 %v358
        %v732 = vunpack.c.l.b16 %v359
        %v733 = vunpack.c.h.b16 %v359
        %v734 = vunpack.c.l.b16 %v360
        %v735 = vunpack.c.h.b16 %v360
        %v736 = vunpack.c.l.b16 %v361
        %v737 = vunpack.c.h.b16 %v361
        %v738 = vunpack.c.l.b16 %v362
        %v739 = vunpack.c.h.b16 %v362
        %v740 = vunpack.c.l.b16 %v363
        %v741 = vunpack.c.h.b16 %v363
        %v742 = vunpack.c.l.b16 %v364
        %v743 = vunpack.c.h.b16 %v364
        %v744 = vunpack.c.l.b16 %v365
        %v745 = vunpack.c.h.b16 %v365
        %v746 = vunpack.c.l.b16 %v366
        %v747 = vunpack.c.h.b16 %v366
        %v748 = vunpack.c.l.b16 %v367
        %v749 = vunpack.c.h.b16 %v367
        %v750 = vunpack.c.l.b16 %v368
        %v751 = vunpack.c.h.b16 %v368
        %v752 = vunpack.c.l.b16 %v369
        %v753 = vunpack.c.h.b16 %v369
        %v754 = vunpack.c.l.b16 %v370
        %v755 = vunpack.c.h.b16 %v370
        %v756 = vunpack.c.l.b16 %v371
        %v757 = vunpack.c.h.b16 %v371
        %v758 = vunpack.c.l.b16 %v372
        %v759 = vunpack.c.h.b16 %v372
        %v760 = vunpack.c.l.b16 %v373
        %v761 = vunpack.c.h.b16 %v373
        %v762 = vunpack.c.l.b16 %v374
        %v763 = vunpack.c.h.b16 %v374
        %v764 = vunpack.c.l.b16 %v375
        %v765 = vunpack.c.h.b16 %v375
        %v766 = vunpack.c.l.b16 %v376
        %v767 = vunpack.c.h.b16 %v376
        %v768 = vunpack.c.l.b16 %v377
        %v769 = vunpack.c.h.b16 %v377
        %v770 = vunpack.c.l.b16 %v378
        %v771 = vunpack.c.h.b16 %v378
        %v772 = vunpack.c.l.b16 %v379
        %v773 = vunpack.c.h.b16 %v379
        %v774 = vunpack.c.l.b16 %v380
        %v775 = vunpack.c.h.b16 %v380
        %v776 = vunpack.c.l.b16 %v381
        %v777 = vunpack.c.h.b16 %v381
        %v778 = vunpack.c.l.b16 %v382
        %v779 = vunpack.c.h.b16 %v382
        %v780 = vunpack.c.l.b16 %v383
        %v781 = vunpack.c.h.b16 %v383
        %v782 = vunpack.c.l.b16 %v384
        %v783 = vunpack.c.h.b16 %v384
        %v784 = vunpack.c.l.b16 %v385
        %v785 = vunpack.c.h.b16 %v385
        %v786 = vunpack.c.l.b16 %v386
        %v787 = vunpack.c.h.b16 %v386
        %v788 = vunpack.c.l.b16 %v387
        %v789 = vunpack.c.h.b16 %v387
        %v790 = vunpack.c.l.b16 %v388
        %v791 = vunpack.c.h.b16 %v388
        %v792 = vunpack.c.l.b16 %v389
        %v793 = vunpack.c.h.b16 %v389
        %v794 = vunpack.c.l.b16 %v390
        %v795 = vunpack.c.h.b16 %v390
        %v796 = vunpack.c.l.b16 %v391
        %v797 = vunpack.c.h.b16 %v391
        %v798 = vunpack.c.l.b16 %v392
        %v799 = vunpack.c.h.b16 %v392
        %v800 = vunpack.c.l.b16 %v393
        %v801 = vunpack.c.h.b16 %v393
        %v802 = vunpack.c.l.b16 %v394
        %v803 = vunpack.c.h.b16 %v394
        %v804 = vunpack.c.l.b16 %v395
        %v805 = vunpack.c.h.b16 %v395
        %v806 = vunpack.c.l.b16 %v396
        %v807 = vunpack.c.h.b16 %v396
        %v808 = vunpack.c.l.b16 %v397
        %v809 = vunpack.c.h.b16 %v397
        %v810 = vunpack.c.l.b16 %v398
        %v811 = vunpack.c.h.b16 %v398
        %v812 = vunpack.c.l.b16 %v399
        %v813 = vunpack.c.h.b16 %v399
        %v814 = vunpack.c.l.b16 %v400
        %v815 = vunpack.c.h.b16 %v400
        %v816 = vunpack.c.l.b16 %v401
        %v817 = vunpack.c.h.b16 %v401
        %v818 = vunpack.c.l.b16 %v402
        %v819 = vunpack.c.h.b16 %v402
        %v820 = vunpack.c.l.b16 %v403
        %v821 = vunpack.c.h.b16 %v403
        %v822 = vunpack.c.l.b16 %v404
        %v823 = vunpack.c.h.b16 %v404
        %v824 = vunpack.c.l.b16 %v405
        %v825 = vunpack.c.h.b16 %v405
        %v826 = vunpack.c.l.b16 %v406
        %v827 = vunpack.c.h.b16 %v406
        %v828 = vunpack.c.l.b16 %v407
        %v829 = vunpack.c.h.b16 %v407
        %v830 = vunpack.c.l.b16 %v408
        %v831 = vunpack.c.h.b16 %v408
        %v832 = vunpack.c.l.b16 %v409
        %v833 = vunpack.c.h.b16 %v409
        %v834 = vunpack.c.l.b16 %v410
        %v835 = vunpack.c.h.b16 %v410
        %v836 = vunpack.c.l.b16 %v411
        %v837 = vunpack.c.h.b16 %v411
        %v838 = vunpack.c.l.b16 %v412
        %v839 = vunpack.c.h.b16 %v412
        %v840 = vunpack.c.l.b16 %v413
        %v841 = vunpack.c.h.b16 %v413
        %v842 = vunpack.c.l.b16 %v414
        %v843 = vunpack.c.h.b16 %v414
        %v844 = vunpack.c.l.b16 %v415
        %v845 = vunpack.c.h.b16 %v415
        %v846 = vunpack.c.l.b16 %v416
        %v847 = vunpack.c.h.b16 %v416
        %v848 = vunpack.c.l.b16 %v417
        %v849 = vunpack.c.h.b16 %v417
        %v850 = vunpack.c.l.b16 %v418
        %v851 = vunpack.c.h.b16 %v418
        %v852 = vunpack.c.l.b16 %v419
        %v853 = vunpack.c.h.b16 %v419
        %v854 = vunpack.c.l.b16 %v420
        %v855 = vunpack.c.h.b16 %v420
        %v856 = vunpack.c.l.b16 %v421
        %v857 = vunpack.c.h.b16 %v421
        %v858 = vunpack.c.l.b16 %v422
        %v859 = vunpack.c.h.b16 %v422
        %v860 = vunpack.c.l.b16 %v423
        %v861 = vunpack.c.h.b16 %v423
        %v862 = vunpack.c.l.b16 %v424
        %v863 = vunpack.c.h.b16 %v424
        %v864 = vunpack.c.l.b16 %v425
        %v865 = vunpack.c.h.b16 %v425
        %v866 = vunpack.c.l.b16 %v426
        %v867 = vunpack.c.h.b16 %v426
        %v868 = vunpack.c.l.b16 %v427
        %v869 = vunpack.c.h.b16 %v427
        %v870 = vunpack.c.l.b16 %v428
        %v871 = vunpack.c.h.b16 %v428
        %v872 = vunpack.c.l.b16 %v429
        %v873 = vunpack.c.h.b16 %v429
        %v874 = vunpack.c.l.b16 %v430
        %v875 = vunpack.c.h.b16 %v430
        %v876 = vunpack.c.l.b16 %v431
        %v877 = vunpack.c.h.b16 %v431
        %v878 = vunpack.c.l.b16 %v432
        %v879 = vunpack.c.h.b16 %v432
        %v880 = vunpack.c.l.b16 %v433
        %v881 = vunpack.c.h.b16 %v433
        %v882 = vunpack.c.l.b16 %v434
        %v883 = vunpack.c.h.b16 %v434
        %v884 = vunpack.c.l.b16 %v435
        %v885 = vunpack.c.h.b16 %v435
        %v886 = vunpack.c.l.b16 %v436
        %v887 = vunpack.c.h.b16 %v436
        %v888 = vunpack.c.l.b16 %v437
        %v889 = vunpack.c.h.b16 %v437
        %v890 = vunpack.c.l.b16 %v438
        %v891 = vunpack.c.h.b16 %v438
        %v892 = vunpack.c.l.b16 %v439
        %v893 = vunpack.c.h.b16 %v439
        %v894 = vunpack.c.l.b16 %v440
        %v895 = vunpack.c.h.b16 %v440
        %v896 = vunpack.c.l.b16 %v441
        %v897 = vunpack.c.h.b16 %v441
        %v898 = vunpack.c.l.b16 %v442
        %v899 = vunpack.c.h.b16 %v442
        %v900 = vunpack.c.l.b16 %v443
        %v901 = vunpack.c.h.b16 %v443
        %v902 = vunpack.c.l.b16 %v444
        %v903 = vunpack.c.h.b16 %v444
        %v904 = vunpack.c.l.b16 %v445
        %v905 = vunpack.c.h.b16 %v445
        %v906 = vunpack.c.l.b16 %v446
        %v907 = vunpack.c.h.b16 %v446
        %v908 = vunpack.c.l.b16 %v447
        %v909 = vunpack.c.h.b16 %v447
        %v910 = vunpack.c.l.b16 %v448
        %v911 = vunpack.c.h.b16 %v448
        %v912 = vunpack.c.l.b16 %v449
        %v913 = vunpack.c.h.b16 %v449
        %v914 = vpack.c.b16 %v628, %v626
        %v915 = vpack.c.b16 %v629, %v627
        %v916 = vpack.c.b16 %v632, %v630
        %v917 = vpack.c.b16 %v633, %v631
        %v918 = vpack.c.b16 %v636, %v634
        %v919 = vpack.c.b16 %v637, %v635
        %v920 = vpack.c.b16 %v640, %v638
        %v921 = vpack.c.b16 %v641, %v639
        %v922 = vpack.c.b16 %v644, %v642
        %v923 = vpack.c.b16 %v645, %v643
        %v924 = vpack.c.b16 %v648, %v646
        %v925 = vpack.c.b16 %v649, %v647
        %v926 = vpack.c.b16 %v652, %v650
        %v927 = vpack.c.b16 %v653, %v651
        %v928 = vpack.c.b16 %v656, %v654
        %v929 = vpack.c.b16 %v657, %v655
        %v930 = vpack.c.b16 %v660, %v658
        %v931 = vpack.c.b16 %v661, %v659
        %v932 = vpack.c.b16 %v664, %v662
        %v933 = vpack.c.b16 %v665, %v663
        %v934 = vpack.c.b16 %v668, %v666
        %v935 = vpack.c.b16 %v669, %v667
        %v936 = vpack.c.b16 %v672, %v670
        %v937 = vpack.c.b16 %v673, %v671
        %v938 = vpack.c.b16 %v676, %v674
        %v939 = vpack.c.b16 %v677, %v675
        %v940 = vpack.c.b16 %v680, %v678
        %v941 = vpack.c.b16 %v681, %v679
        %v942 = vpack.c.b16 %v684, %v682
        %v943 = vpack.c.b16 %v685, %v683
        %v944 = vpack.c.b16 %v688, %v686
        %v945 = vpack.c.b16 %v689, %v687
        %v946 = vpack.c.b16 %v692, %v690
        %v947 = vpack.c.b16 %v693, %v691
        %v948 = vpack.c.b16 %v696, %v694
        %v949 = vpack.c.b16 %v697, %v695
        %v950 = vpack.c.b16 %v700, %v698
        %v951 = vpack.c.b16 %v701, %v699
        %v952 = vpack.c.b16 %v704, %v702
        %v953 = vpack.c.b16 %v705, %v703
        %v954 = vpack.c.b16 %v708, %v706
        %v955 = vpack.c.b16 %v709, %v707
        %v956 = vpack.c.b16 %v712, %v710
        %v957 = vpack.c.b16 %v713, %v711
        %v958 = vpack.c.b16 %v716, %v714
        %v959 = vpack.c.b16 %v717, %v715
        %v960 = vpack.c.b16 %v720, %v718
        %v961 = vpack.c.b16 %v721, %v719
        %v962 = vpack.c.b16 %v724, %v722
        %v963 = vpack.c.b16 %v725, %v723
        %v964 = vpack.c.b16 %v728, %v726
        %v965 = vpack.c.b16 %v729, %v727
        %v966 = vpack.c.b16 %v732, %v730
        %v967 = vpack.c.b16 %v733, %v731
        %v968 = vpack.c.b16 %v736, %v734
        %v969 = vpack.c.b16 %v737, %v735
        %v970 = vpack.c.b16 %v740, %v738
        %v971 = vpack.c.b16 %v741, %v739
        %v972 = vpack.c.b16 %v744, %v742
        %v973 = vpack.c.b16 %v745, %v743
        %v974 = vpack.c.b16 %v748, %v746
        %v975 = vpack.c.b16 %v749, %v747
        %v976 = vpack.c.b16 %v752, %v750
        %v977 = vpack.c.b16 %v753, %v751
        %v978 = vpack.c.b16 %v756, %v754
        %v979 = vpack.c.b16 %v757, %v755
        %v980 = vpack.c.b16 %v760, %v758
        %v981 = vpack.c.b16 %v761, %v759
        %v982 = vpack.c.b16 %v764, %v762
        %v983 = vpack.c.b16 %v765, %v763
        %v984 = vpack.c.b16 %v768, %v766
        %v985 = vpack.c.b16 %v769, %v767
        %v986 = vpack.c.b16 %v772, %v770
        %v987 = vpack.c.b16 %v773, %v771
        %v988 = vpack.c.b16 %v776, %v774
        %v989 = vpack.c.b16 %v777, %v775
        %v990 = vpack.c.b16 %v780, %v778
        %v991 = vpack.c.b16 %v781, %v779
        %v992 = vpack.c.b16 %v784, %v782
        %v993 = vpack.c.b16 %v785, %v783
        %v994 = vpack.c.b16 %v788, %v786
        %v995 = vpack.c.b16 %v789, %v787
        %v996 = vpack.c.b16 %v792, %v790
        %v997 = vpack.c.b16 %v793, %v791
        %v998 = vpack.c.b16 %v796, %v794
        %v999 = vpack.c.b16 %v797, %v795
        %v1000 = vpack.c.b16 %v800, %v798
        %v1001 = vpack.c.b16 %v801, %v799
        %v1002 = vpack.c.b16 %v804, %v802
        %v1003 = vpack.c.b16 %v805, %v803
        %v1004 = vpack.c.b16 %v808, %v806
        %v1005 = vpack.c.b16 %v809, %v807
        %v1006 = vpack.c.b16 %v812, %v810
        %v1007 = vpack.c.b16 %v813, %v811
        %v1008 = vpack.c.b16 %v816, %v814
        %v1009 = vpack.c.b16 %v817, %v815
        %v1010 = vpack.c.b16 %v820, %v818
        %v1011 = vpack.c.b16 %v821, %v819
        %v1012 = vpack.c.b16 %v824, %v822
        %v1013 = vpack.c.b16 %v825, %v823
        %v1014 = vpack.c.b16 %v828, %v826
        %v1015 = vpack.c.b16 %v829, %v827
        %v1016 = vpack.c.b16 %v832, %v830
        %v1017 = vpack.c.b16 %v833, %v831
        %v1018 = vpack.c.b16 %v836, %v834
        %v1019 = vpack.c.b16 %v837, %v835
        %v1020 = vpack.c.b16 %v840, %v838
        %v1021 = vpack.c.b16 %v841, %v839
        %v1022 = vpack.c.b16 %v844, %v842
        %v1023 = vpack.c.b16 %v845, %v843
        %v1024 = vpack.c.b16 %v848, %v846
        %v1025 = vpack.c.b16 %v849, %v847
        %v1026 = vpack.c.b16 %v852, %v850
        %v1027 = vpack.c.b16 %v853, %v851
        %v1028 = vpack.c.b16 %v856, %v854
        %v1029 = vpack.c.b16 %v857, %v855
        %v1030 = vpack.c.b16 %v860, %v858
        %v1031 = vpack.c.b16 %v861, %v859
        %v1032 = vpack.c.b16 %v864, %v862
        %v1033 = vpack.c.b16 %v865, %v863
        %v1034 = vpack.c.b16 %v868, %v866
        %v1035 = vpack.c.b16 %v869, %v867
        %v1036 = vpack.c.b16 %v872, %v870
        %v1037 = vpack.c.b16 %v873, %v871
        %v1038 = vpack.c.b16 %v876, %v874
        %v1039 = vpack.c.b16 %v877, %v875
        %v1040 = vpack.c.b16 %v880, %v878
        %v1041 = vpack.c.b16 %v881, %v879
        %v1042 = vpack.c.b16 %v884, %v882
        %v1043 = vpack.c.b16 %v885, %v883
        %v1044 = vpack.c.b16 %v888, %v886
        %v1045 = vpack.c.b16 %v889, %v887
        %v1046 = vpack.c.b16 %v892, %v890
        %v1047 = vpack.c.b16 %v893, %v891
        %v1048 = vpack.c.b16 %v896, %v894
        %v1049 = vpack.c.b16 %v897, %v895
        %v1050 = vpack.c.b16 %v900, %v898
        %v1051 = vpack.c.b16 %v901, %v899
        %v1052 = vpack.c.b16 %v904, %v902
        %v1053 = vpack.c.b16 %v905, %v903
        %v1054 = vpack.c.b16 %v908, %v906
        %v1055 = vpack.c.b16 %v909, %v907
        %v1056 = vpack.c.b16 %v912, %v910
        %v1057 = vpack.c.b16 %v913, %v911
        %1202 = vmatprep.subr.bf16.mxu0 %v915
        %1203 = vmatpush1.bf16.msra.mxu0 %v914
        %1204 = vmatprep.subr.bf16.mxu0 %v917
        %1205 = vmatpush1.bf16.msra.mxu0 %v916
        %1206 = vmatprep.subr.bf16.mxu0 %v919
        %1207 = vmatpush1.bf16.msra.mxu0 %v918
        %1208 = vmatprep.subr.bf16.mxu0 %v921
        %1209 = vmatpush1.bf16.msra.mxu0 %v920
        %1210 = vmatprep.subr.bf16.mxu0 %v923
        %1211 = vmatpush1.bf16.msra.mxu0 %v922
        %1212 = vmatprep.subr.bf16.mxu0 %v925
        %1213 = vmatpush1.bf16.msra.mxu0 %v924
        %1214 = vmatprep.subr.bf16.mxu0 %v927
        %1215 = vmatpush1.bf16.msra.mxu0 %v926
        %1216 = vmatprep.subr.bf16.mxu0 %v929
        %1217 = vmatpush1.bf16.msra.mxu0 %v928
        %1218 = vmatprep.subr.bf16.mxu0 %v931
        %1219 = vmatpush1.bf16.msra.mxu0 %v930
        %1220 = vmatprep.subr.bf16.mxu0 %v933
        %1221 = vmatpush1.bf16.msra.mxu0 %v932
        %1222 = vmatprep.subr.bf16.mxu0 %v935
        %1223 = vmatpush1.bf16.msra.mxu0 %v934
        %1224 = vmatprep.subr.bf16.mxu0 %v937
        %1225 = vmatpush1.bf16.msra.mxu0 %v936
        %1226 = vmatprep.subr.bf16.mxu0 %v939
        %1227 = vmatpush1.bf16.msra.mxu0 %v938
        %1228 = vmatprep.subr.bf16.mxu0 %v941
        %1229 = vmatpush1.bf16.msra.mxu0 %v940
        %1230 = vmatprep.subr.bf16.mxu0 %v943
        %1231 = vmatpush1.bf16.msra.mxu0 %v942
        %1232 = vmatprep.subr.bf16.mxu0 %v945
        %1233 = vmatpush1.bf16.msra.mxu0 %v944
        %1234 = vmatprep.mubr.bf16.mxu0 %v465
        %1235 = vmatmul.mubr.bf16.gmra.mrb[0].mxu0 %v464
        %v1236 = vpop.f32.mrb[0].mxu0
        %v1237 = vadd.f32 0.0, %v1236
        %v1238 = vpop.f32.mrb[0].mxu0
        %v1239 = vadd.f32 0.0, %v1238
        %v1240 = vpop.f32.mrb[0].mxu0
        %v1241 = vpop.f32.mrb[0].mxu0
        %1242 = vdwg.mxu0
        %1243 = vmatprep.subr.bf16.mxu0 %v947
        %1244 = vmatpush1.bf16.msra.mxu0 %v946
        %1245 = vmatprep.subr.bf16.mxu0 %v949
        %1246 = vmatpush1.bf16.msra.mxu0 %v948
        %1247 = vmatprep.subr.bf16.mxu0 %v951
        %1248 = vmatpush1.bf16.msra.mxu0 %v950
        %1249 = vmatprep.subr.bf16.mxu0 %v953
        %1250 = vmatpush1.bf16.msra.mxu0 %v952
        %1251 = vmatprep.subr.bf16.mxu0 %v955
        %1252 = vmatpush1.bf16.msra.mxu0 %v954
        %1253 = vmatprep.subr.bf16.mxu0 %v957
        %1254 = vmatpush1.bf16.msra.mxu0 %v956
        %1255 = vmatprep.subr.bf16.mxu0 %v959
        %1256 = vmatpush1.bf16.msra.mxu0 %v958
        %1257 = vmatprep.subr.bf16.mxu0 %v961
        %1258 = vmatpush1.bf16.msra.mxu0 %v960
        %1259 = vmatprep.subr.bf16.mxu0 %v963
        %1260 = vmatpush1.bf16.msra.mxu0 %v962
        %1261 = vmatprep.subr.bf16.mxu0 %v965
        %1262 = vmatpush1.bf16.msra.mxu0 %v964
        %1263 = vmatprep.subr.bf16.mxu0 %v967
        %1264 = vmatpush1.bf16.msra.mxu0 %v966
        %1265 = vmatprep.subr.bf16.mxu0 %v969
        %1266 = vmatpush1.bf16.msra.mxu0 %v968
        %1267 = vmatprep.subr.bf16.mxu0 %v971
        %1268 = vmatpush1.bf16.msra.mxu0 %v970
        %1269 = vmatprep.subr.bf16.mxu0 %v973
        %1270 = vmatpush1.bf16.msra.mxu0 %v972
        %1271 = vmatprep.subr.bf16.mxu0 %v975
        %1272 = vmatpush1.bf16.msra.mxu0 %v974
        %1273 = vmatprep.subr.bf16.mxu0 %v977
        %1274 = vmatpush1.bf16.msra.mxu0 %v976
        %1275 = vmatprep.mubr.bf16.mxu0 %v467
        %1276 = vmatmul.mubr.bf16.gmra.mrb[0].mxu0 %v466
        %v1277 = vpop.f32.mrb[0].mxu0
        %v1278 = vadd.f32 %v1237, %v1277
        %v1279 = vpop.f32.mrb[0].mxu0
        %v1280 = vadd.f32 %v1239, %v1279
        %v1281 = vpop.f32.mrb[0].mxu0
        %v1282 = vpop.f32.mrb[0].mxu0
        %1283 = vdwg.mxu0
        %1284 = vmatprep.subr.bf16.mxu0 %v979
        %1285 = vmatpush1.bf16.msra.mxu0 %v978
        %1286 = vmatprep.subr.bf16.mxu0 %v981
        %1287 = vmatpush1.bf16.msra.mxu0 %v980
        %1288 = vmatprep.subr.bf16.mxu0 %v983
        %1289 = vmatpush1.bf16.msra.mxu0 %v982
        %1290 = vmatprep.subr.bf16.mxu0 %v985
        %1291 = vmatpush1.bf16.msra.mxu0 %v984
        %1292 = vmatprep.subr.bf16.mxu0 %v987
        %1293 = vmatpush1.bf16.msra.mxu0 %v986
        %1294 = vmatprep.subr.bf16.mxu0 %v989
        %1295 = vmatpush1.bf16.msra.mxu0 %v988
        %1296 = vmatprep.subr.bf16.mxu0 %v991
        %1297 = vmatpush1.bf16.msra.mxu0 %v990
        %1298 = vmatprep.subr.bf16.mxu0 %v993
        %1299 = vmatpush1.bf16.msra.mxu0 %v992
        %1300 = vmatprep.subr.bf16.mxu0 %v995
        %1301 = vmatpush1.bf16.msra.mxu0 %v994
        %1302 = vmatprep.subr.bf16.mxu0 %v997
        %1303 = vmatpush1.bf16.msra.mxu0 %v996
        %1304 = vmatprep.subr.bf16.mxu0 %v999
        %1305 = vmatpush1.bf16.msra.mxu0 %v998
        %1306 = vmatprep.subr.bf16.mxu0 %v1001
        %1307 = vmatpush1.bf16.msra.mxu0 %v1000
        %1308 = vmatprep.subr.bf16.mxu0 %v1003
        %1309 = vmatpush1.bf16.msra.mxu0 %v1002
        %1310 = vmatprep.subr.bf16.mxu0 %v1005
        %1311 = vmatpush1.bf16.msra.mxu0 %v1004
        %1312 = vmatprep.subr.bf16.mxu0 %v1007
        %1313 = vmatpush1.bf16.msra.mxu0 %v1006
        %1314 = vmatprep.subr.bf16.mxu0 %v1009
        %1315 = vmatpush1.bf16.msra.mxu0 %v1008
        %1316 = vmatprep.mubr.bf16.mxu0 %v469
        %1317 = vmatmul.mubr.bf16.gmra.mrb[0].mxu0 %v468
        %v1318 = vpop.f32.mrb[0].mxu0
        %v1319 = vadd.f32 %v1278, %v1318
        %v1320 = vpop.f32.mrb[0].mxu0
        %v1321 = vadd.f32 %v1280, %v1320
        %v1322 = vpop.f32.mrb[0].mxu0
        %v1323 = vpop.f32.mrb[0].mxu0
        %1324 = vdwg.mxu0
        %1325 = vmatprep.subr.bf16.mxu0 %v1011
        %1326 = vmatpush1.bf16.msra.mxu0 %v1010
        %1327 = vmatprep.subr.bf16.mxu0 %v1013
        %1328 = vmatpush1.bf16.msra.mxu0 %v1012
        %1329 = vmatprep.subr.bf16.mxu0 %v1015
        %1330 = vmatpush1.bf16.msra.mxu0 %v1014
        %1331 = vmatprep.subr.bf16.mxu0 %v1017
        %1332 = vmatpush1.bf16.msra.mxu0 %v1016
        %1333 = vmatprep.subr.bf16.mxu0 %v1019
        %1334 = vmatpush1.bf16.msra.mxu0 %v1018
        %1335 = vmatprep.subr.bf16.mxu0 %v1021
        %1336 = vmatpush1.bf16.msra.mxu0 %v1020
        %1337 = vmatprep.subr.bf16.mxu0 %v1023
        %1338 = vmatpush1.bf16.msra.mxu0 %v1022
        %1339 = vmatprep.subr.bf16.mxu0 %v1025
        %1340 = vmatpush1.bf16.msra.mxu0 %v1024
        %1341 = vmatprep.subr.bf16.mxu0 %v1027
        %1342 = vmatpush1.bf16.msra.mxu0 %v1026
        %1343 = vmatprep.subr.bf16.mxu0 %v1029
        %1344 = vmatpush1.bf16.msra.mxu0 %v1028
        %1345 = vmatprep.subr.bf16.mxu0 %v1031
        %1346 = vmatpush1.bf16.msra.mxu0 %v1030
        %1347 = vmatprep.subr.bf16.mxu0 %v1033
        %1348 = vmatpush1.bf16.msra.mxu0 %v1032
        %1349 = vmatprep.subr.bf16.mxu0 %v1035
        %1350 = vmatpush1.bf16.msra.mxu0 %v1034
        %1351 = vmatprep.subr.bf16.mxu0 %v1037
        %1352 = vmatpush1.bf16.msra.mxu0 %v1036
        %1353 = vmatprep.subr.bf16.mxu0 %v1039
        %1354 = vmatpush1.bf16.msra.mxu0 %v1038
        %1355 = vmatprep.subr.bf16.mxu0 %v1041
        %1356 = vmatpush1.bf16.msra.mxu0 %v1040
        %1357 = vmatprep.mubr.bf16.mxu0 %v471
        %1358 = vmatmul.mubr.bf16.gmra.mrb[0].mxu0 %v470
        %v1359 = vpop.f32.mrb[0].mxu0
        %v1360 = vadd.f32 %v1319, %v1359
        %v1361 = vpop.f32.mrb[0].mxu0
        %v1362 = vadd.f32 %v1321, %v1361
        %v1363 = vpop.f32.mrb[0].mxu0
        %v1364 = vpop.f32.mrb[0].mxu0
        %1365 = vdwg.mxu0
        %1366 = vmatprep.subr.bf16.mxu0 %v1043
        %1367 = vmatpush1.bf16.msra.mxu0 %v1042
        %1368 = vmatprep.subr.bf16.mxu0 %v1045
        %1369 = vmatpush1.bf16.msra.mxu0 %v1044
        %1370 = vmatprep.subr.bf16.mxu0 %v1047
        %1371 = vmatpush1.bf16.msra.mxu0 %v1046
        %1372 = vmatprep.subr.bf16.mxu0 %v1049
        %1373 = vmatpush1.bf16.msra.mxu0 %v1048
        %1374 = vmatprep.subr.bf16.mxu0 %v1051
        %1375 = vmatpush1.bf16.msra.mxu0 %v1050
        %1376 = vmatprep.subr.bf16.mxu0 %v1053
        %1377 = vmatpush1.bf16.msra.mxu0 %v1052
        %1378 = vmatprep.subr.bf16.mxu0 %v1055
        %1379 = vmatpush1.bf16.msra.mxu0 %v1054
        %1380 = vmatprep.subr.bf16.mxu0 %v1057
        %1381 = vmatpush1.bf16.msra.mxu0 %v1056
        %1382 = vmatprep.subr.bf16.mxu0 0
        %1383 = vmatpush1.bf16.msra.mxu0 0
        %1384 = vmatprep.subr.bf16.mxu0 0
        %1385 = vmatpush1.bf16.msra.mxu0 0
        %1386 = vmatprep.subr.bf16.mxu0 0
        %1387 = vmatpush1.bf16.msra.mxu0 0
        %1388 = vmatprep.subr.bf16.mxu0 0
        %1389 = vmatpush1.bf16.msra.mxu0 0
        %1390 = vmatprep.subr.bf16.mxu0 0
        %1391 = vmatpush1.bf16.msra.mxu0 0
        %1392 = vmatprep.subr.bf16.mxu0 0
        %1393 = vmatpush1.bf16.msra.mxu0 0
        %1394 = vmatprep.subr.bf16.mxu0 0
        %1395 = vmatpush1.bf16.msra.mxu0 0
        %1396 = vmatprep.subr.bf16.mxu0 0
        %1397 = vmatpush1.bf16.msra.mxu0 0
        %1398 = vmatprep.mubr.bf16.mxu0 0
        %1399 = vmatmul.mubr.bf16.gmra.mrb[0].mxu0 %v472
        %v1400 = vpop.f32.mrb[0].mxu0
        %v1401 = vadd.f32 %v1360, %v1400
        %v1402 = vpop.f32.mrb[0].mxu0
        %v1403 = vadd.f32 %v1362, %v1402
        %v1404 = vpop.f32.mrb[0].mxu0
        %v1405 = vpop.f32.mrb[0].mxu0
        %1406 = vdwg.mxu0
        %v1407 = vmul.f32 %v1401, %v305
        %v1408 = vmul.f32 %v1403, %v305
        %v1409 = vld [vmem:[%s2] sm:$0x3]
        %v1411 = vlaneseq
        %v1412 = vshrl.u32 %v1411, 7
        %v1413 = vsub.s32 0, %v1412
        %v1414 = vrot.slane %v1409, %v1413
        %v1415 = vlaneseq
        %v1416 = vshrl.u32 %v1415, 7
        %v1417 = vsub.s32 1, %v1416
        %v1418 = vrot.slane %v1409, %v1417
        %v1421 = vadd.f32 %v1407, %v1414
        %v1422 = vadd.f32 %v1408, %v1418
        %v1423 = vtanh.pop %v1421
        %v1424 = vtanh.pop %v1422
        %v1425 = vpack.c.bf16 %v1423, %v1423
        %v1426 = vpack.c.bf16 %v1424, %v1424
        %v1427 = vld [vmem:[#allocation7] sm:$0xf]
        %v1428 = vld [vmem:[#allocation7 + $0x4] sm:$0xf]
        %v1429 = vld [vmem:[#allocation7 + $0x8] sm:$0xf]
        %v1430 = vld [vmem:[#allocation7 + $0xc] sm:$0xf]
        %v1431 = vld [vmem:[#allocation7 + $0x10] sm:$0xf]
        %v1432 = vld [vmem:[#allocation7 + $0x14] sm:$0xf]
        %v1433 = vld [vmem:[#allocation7 + $0x18] sm:$0xf]
        %v1434 = vld [vmem:[#allocation7 + $0x1c] sm:$0xf]
        %v1435 = vld [vmem:[#allocation7 + $0x20] sm:$0xf]
        %v1436 = vld [vmem:[#allocation7 + $0x24] sm:$0xf]
        %v1437 = vld [vmem:[#allocation7 + $0x28] sm:$0xf]
        %v1438 = vld [vmem:[#allocation7 + $0x2c] sm:$0xf]
        %v1439 = vld [vmem:[#allocation7 + $0x30] sm:$0xf]
        %v1440 = vld [vmem:[#allocation7 + $0x34] sm:$0xf]
        %v1441 = vld [vmem:[#allocation7 + $0x38] sm:$0xf]
        %v1442 = vld [vmem:[#allocation7 + $0x3c] sm:$0xf]
        %v1443 = vld [vmem:[#allocation7 + $0x40] sm:$0xf]
        %v1444 = vld [vmem:[#allocation7 + $0x44] sm:$0xf]
        %v1445 = vld [vmem:[#allocation7 + $0x48] sm:$0xf]
        %v1446 = vld [vmem:[#allocation7 + $0x4c] sm:$0xf]
        %v1447 = vld [vmem:[#allocation7 + $0x50] sm:$0xf]
        %v1448 = vld [vmem:[#allocation7 + $0x54] sm:$0xf]
        %v1449 = vld [vmem:[#allocation7 + $0x58] sm:$0xf]
        %v1450 = vld [vmem:[#allocation7 + $0x5c] sm:$0xf]
        %v1451 = vld [vmem:[#allocation7 + $0x60] sm:$0xf]
        %v1452 = vld [vmem:[#allocation7 + $0x64] sm:$0xf]
        %v1453 = vld [vmem:[#allocation7 + $0x68] sm:$0xf]
        %v1454 = vld [vmem:[#allocation7 + $0x6c] sm:$0xf]
        %v1455 = vld [vmem:[#allocation7 + $0x70] sm:$0xf]
        %v1456 = vld [vmem:[#allocation7 + $0x74] sm:$0xf]
        %v1457 = vld [vmem:[#allocation7 + $0x78] sm:$0xf]
        %v1458 = vld [vmem:[#allocation7 + $0x7c] sm:$0xf]
        %v1459 = vld [vmem:[%s4] sm:$0x1]
        %v1461 = vlaneseq
        %v1462 = vshrl.u32 %v1461, 7
        %v1463 = vsub.s32 0, %v1462
        %v1464 = vrot.slane %v1459, %v1463
        %v1498 = vunpack.c.l.b16 %v1427
        %v1499 = vunpack.c.l.b16 %v1428
        %v1500 = vunpack.c.l.b16 %v1429
        %v1501 = vunpack.c.l.b16 %v1430
        %v1502 = vunpack.c.l.b16 %v1431
        %v1503 = vunpack.c.l.b16 %v1432
        %v1504 = vunpack.c.l.b16 %v1433
        %v1505 = vunpack.c.l.b16 %v1434
        %v1506 = vunpack.c.l.b16 %v1435
        %v1507 = vunpack.c.l.b16 %v1436
        %v1508 = vunpack.c.l.b16 %v1437
        %v1509 = vunpack.c.l.b16 %v1438
        %v1510 = vunpack.c.l.b16 %v1439
        %v1511 = vunpack.c.l.b16 %v1440
        %v1512 = vunpack.c.l.b16 %v1441
        %v1513 = vunpack.c.l.b16 %v1442
        %v1514 = vunpack.c.l.b16 %v1443
        %v1515 = vunpack.c.l.b16 %v1444
        %v1516 = vunpack.c.l.b16 %v1445
        %v1517 = vunpack.c.l.b16 %v1446
        %v1518 = vunpack.c.l.b16 %v1447
        %v1519 = vunpack.c.l.b16 %v1448
        %v1520 = vunpack.c.l.b16 %v1449
        %v1521 = vunpack.c.l.b16 %v1450
        %v1522 = vunpack.c.l.b16 %v1451
        %v1523 = vunpack.c.l.b16 %v1452
        %v1524 = vunpack.c.l.b16 %v1453
        %v1525 = vunpack.c.l.b16 %v1454
        %v1526 = vunpack.c.l.b16 %v1455
        %v1527 = vunpack.c.l.b16 %v1456
        %v1528 = vunpack.c.l.b16 %v1457
        %v1529 = vunpack.c.l.b16 %v1458
        %v1530 = vpack.c.b16 %v1499, %v1498
        %v1531 = vpack.c.b16 %v1501, %v1500
        %v1532 = vpack.c.b16 %v1503, %v1502
        %v1533 = vpack.c.b16 %v1505, %v1504
        %v1534 = vpack.c.b16 %v1507, %v1506
        %v1535 = vpack.c.b16 %v1509, %v1508
        %v1536 = vpack.c.b16 %v1511, %v1510
        %v1537 = vpack.c.b16 %v1513, %v1512
        %v1538 = vpack.c.b16 %v1515, %v1514
        %v1539 = vpack.c.b16 %v1517, %v1516
        %v1540 = vpack.c.b16 %v1519, %v1518
        %v1541 = vpack.c.b16 %v1521, %v1520
        %v1542 = vpack.c.b16 %v1523, %v1522
        %v1543 = vpack.c.b16 %v1525, %v1524
        %v1544 = vpack.c.b16 %v1527, %v1526
        %v1545 = vpack.c.b16 %v1529, %v1528
        %1562 = vmatprep.subr.bf16.mxu0 0
        %1563 = vmatpush1.bf16.msra.mxu0 %v1530
        %1564 = vmatprep.subr.bf16.mxu0 0
        %1565 = vmatpush1.bf16.msra.mxu0 %v1531
        %1566 = vmatprep.subr.bf16.mxu0 0
        %1567 = vmatpush1.bf16.msra.mxu0 %v1532
        %1568 = vmatprep.subr.bf16.mxu0 0
        %1569 = vmatpush1.bf16.msra.mxu0 %v1533
        %1570 = vmatprep.subr.bf16.mxu0 0
        %1571 = vmatpush1.bf16.msra.mxu0 %v1534
        %1572 = vmatprep.subr.bf16.mxu0 0
        %1573 = vmatpush1.bf16.msra.mxu0 %v1535
        %1574 = vmatprep.subr.bf16.mxu0 0
        %1575 = vmatpush1.bf16.msra.mxu0 %v1536
        %1576 = vmatprep.subr.bf16.mxu0 0
        %1577 = vmatpush1.bf16.msra.mxu0 %v1537
        %1578 = vmatprep.subr.bf16.mxu0 0
        %1579 = vmatpush1.bf16.msra.mxu0 %v1538
        %1580 = vmatprep.subr.bf16.mxu0 0
        %1581 = vmatpush1.bf16.msra.mxu0 %v1539
        %1582 = vmatprep.subr.bf16.mxu0 0
        %1583 = vmatpush1.bf16.msra.mxu0 %v1540
        %1584 = vmatprep.subr.bf16.mxu0 0
        %1585 = vmatpush1.bf16.msra.mxu0 %v1541
        %1586 = vmatprep.subr.bf16.mxu0 0
        %1587 = vmatpush1.bf16.msra.mxu0 %v1542
        %1588 = vmatprep.subr.bf16.mxu0 0
        %1589 = vmatpush1.bf16.msra.mxu0 %v1543
        %1590 = vmatprep.subr.bf16.mxu0 0
        %1591 = vmatpush1.bf16.msra.mxu0 %v1544
        %1592 = vmatprep.subr.bf16.mxu0 0
        %1593 = vmatpush1.bf16.msra.mxu0 %v1545
        %1594 = vmatprep.mubr.bf16.mxu0 %v1426
        %1595 = vmatmul.mubr.bf16.gmra.mrb[0].mxu0 %v1425
        %v1596 = vpop.f32.mrb[0].mxu0
        %v1597 = vadd.f32 %v1464, %v1596
        %v1598 = vpop.f32.mrb[0].mxu0
        %v1599 = vpop.f32.mrb[0].mxu0
        %v1600 = vpop.f32.mrb[0].mxu0
        %1601 = vdwg.mxu0
        %1602 = vst [vmem:[%s269] sm:$0xff] %v1597
        %s1603 = sand.u32 %s141, 1
        %s1604 = scalar_lea.sflag [#allocation4], %s1603
        %s1605 = sand.u32 %s141, 1
        %s1606 = smul.addr %s1605, 8
        %s1607 = scalar_lea.vmem [#allocation8], %s1606
        // Predicated region
        $region53: #{_forward_resident.1} parent=39 // pred_check
          %p1608 = pneg %p151
        $region54: #{_forward_resident.1} parent=39 // pred_check_branch
          %1610 = sbr.rel (%p1608) target = $region56
        $region55: #{_forward_resident.1} parent=39 // pred_region
          %s1612 = ssub.s32 128, 128
          %1613 = vsyncadd %s1604, %s1612
          %s1614 = smul.addr %s23, 128
          %s1615 = scalar_lea.hbm %s5, %s1614
          %s1617 = sshll.u32 %s1607, 4
          %s1618 = int_to_ptr.vmem [resolvable:$true] %s1617
          %1620 = dma.vmem_to_hbm [thread:$0]  %s1618, 128, %s1615, %s1604
        $region56: #{_forward_resident.1} parent=39 // pred_fallthru
          _
      $region40: #{_forward_resident.1} parent=5 // pred_fallthru
        _
      %p1621 = scmp.le.s32.totalorder 2, %s18
      // Predicated region
      $region57: #{_forward_resident.1} parent=5 // pred_check
        %p1622 = pneg %p1621
      $region58: #{_forward_resident.1} parent=5 // pred_check_branch
        %1624 = sbr.rel (%p1622) target = $region60
      $region59: #{_forward_resident.1} parent=5 // pred_region
        %s1625 = ssub.s32 %s18, 2
        // Predicated region
        $region61: #{_forward_resident.1} parent=59 // pred_check
          %p1626 = pneg %p157
        $region62: #{_forward_resident.1} parent=59 // pred_check_branch
          %1628 = sbr.rel (%p1626) target = $region64
        $region63: #{_forward_resident.1} parent=59 // pred_region
          %s1629 = sand.u32 %s142, 1
          %s1630 = scalar_lea.sflag [#allocation4], %s1629
          %s1631 = sand.u32 %s142, 1
          %s1632 = smul.addr %s1631, 8
          %s1633 = scalar_lea.vmem [#allocation8], %s1632
          %1634 = dma.done %s1630, 128
        $region64: #{_forward_resident.1} parent=59 // pred_fallthru
          _
      $region60: #{_forward_resident.1} parent=5 // pred_fallthru
        _
    $region6: #{_forward_resident.1} parent=1 // loop_footer
      %s22 = sadd.s32 1, %s18
    $region7: #{_forward_resident.1} parent=1 // loop_footer_branch
      %17 = sbr.rel target = $region3
    $region8: #{_forward_resident.1} parent=1 // loop_exit
      _
    %1635 = vsyncpa [#allocation3], 1
    %s1636 = scalar_lea.sflag [#allocation3], 1
    %1637 = vsyncpa %s1636, 1
    %1638 = vsyncpa [#allocation6], 1
    %1639 = vsyncpa [#allocation4], 1
    %s1640 = scalar_lea.sflag [#allocation4], 1
    %1641 = vsyncpa %s1640, 1

</llo_original>
